<compile_context>
chip_gen: v6e
topology: v6e:2x2x1
jax: 0.10.0
libtpu: 0.0.40
codegen_flags: <defaults>
</compile_context>

<pallas_src>
import functools

import jax
import jax.numpy as jnp
import numpy as np
from jax import lax
from jax.experimental import pallas as pl
from jax.experimental.pallas import tpu as pltpu


def _round_up(a, m):
    return (a + m - 1) // m * m


def _pick_tile(dim, cap, align):
    """Largest multiple of `align` <= cap that divides `dim` (dim is a multiple of align)."""
    t = min(cap, dim)
    t = max(align, (t // align) * align)
    while dim % t:
        t -= align
    return t


def _is_binary_mask(layer_mask):
    """True when every mask entry is exactly 0 or 1 (the usual check-node adjacency),
    which lets the kernel drop the per-k mask-value factor. Traced masks -> False
    (general exact path)."""
    try:
        m = np.asarray(layer_mask)
    except Exception:
        return False
    return bool(np.all((m == 0.0) | (m == 1.0)))


def _cn_update_reference(x, layer_mask):
    """Pure-JAX reference with identical semantics to the PyTorch loop.
    Also used as the small-problem fast path."""
    xm = x[:, None, :] * layer_mask[None, :, :]                  # (B, N, K)
    nz = xm != 0.0
    prod = jnp.prod(jnp.where(nz, xm, jnp.ones_like(xm)), axis=-1)
    return jnp.where(jnp.any(nz, axis=-1), prod, jnp.zeros_like(prod)).astype(x.dtype)


def _cn_update_kernel(x_ref, mask_ref, o_ref, *, chunk, mask_is_binary):
    # x_ref:    (tb, K)   batch rows x in_features
    # mask_ref: (K, tn)   in_features x out_features (transposed mask tile, lane dim = N)
    # o_ref:    (tb, tn)
    tb, k_dim = x_ref.shape
    tn = o_ref.shape[1]

    # ---- hoisted once per block: everything here is on the small (K, tn) tile ----
    mv = mask_ref[...].astype(jnp.float32)           # (K, tn)
    mb = mv != 0.0                                    # (K, tn) nonzero-mask pattern
    mb_bf16 = mb.astype(jnp.bfloat16)                 # 0/1 operand for the exact nz-count matmul
    m_safe = None
    if not mask_is_binary:
        m_safe = jnp.where(mb, mv, 1.0)               # mask value where nonzero, else 1

    n_chunks = tb // chunk

    def chunk_body(c, carry):
        r0 = pl.multiple_of(c * chunk, chunk)
        # ---- hoisted once per chunk: small (chunk, K) tile ----
        xv = x_ref[pl.ds(r0, chunk), :].astype(jnp.float32)      # (chunk, K)
        x_nz = xv != 0.0
        x_safe = jnp.where(x_nz, xv, 1.0)

        # any-nonzero gate via one MXU matmul: count of k with x!=0 AND mask!=0.
        # Exact: operands are 0/1 in bf16, accumulation is f32.
        nz_cnt = jnp.dot(x_nz.astype(jnp.bfloat16), mb_bf16,
                         preferred_element_type=jnp.float32)     # (chunk, tn)

        # Product of the non-zero masked inputs. acc is (chunk, tn) f32 -> a handful of
        # vregs, vreg-resident across the whole unrolled K reduction; stored once below.
        acc = jnp.ones((chunk, tn), jnp.float32)
        for k in range(k_dim):                                    # static unroll, K innermost
            # factor from x: x where (mask!=0 and x!=0), else 1
            acc = acc * jnp.where(mb[k:k + 1, :], x_safe[:, k:k + 1], 1.0)
            if not mask_is_binary:
                # factor from the mask value itself (== 1 everywhere for binary masks)
                acc = acc * jnp.where(x_nz[:, k:k + 1], m_safe[k:k + 1, :], 1.0)

        o_ref[pl.ds(r0, chunk), :] = jnp.where(nz_cnt > 0.0, acc, 0.0).astype(o_ref.dtype)
        return carry

    lax.fori_loop(0, n_chunks, chunk_body, 0)


def cn_update_forward(x, layer_mask, *, tb=None, tn=None, chunk=8, use_pallas=None):
    """CnUpdateLayer.forward. x: (B, in_features); layer_mask: (out_features, in_features)."""
    B, K = x.shape
    N, K2 = layer_mask.shape
    assert K == K2, "layer_mask must be (out_features, in_features)"

    if use_pallas is None:
        # Small-problem fast path: below ~64K output elements, per-step pipeline
        # overhead plus pad/slice copies exceed the entire compute -> plain XLA wins.
        use_pallas = (B * N >= 64 * 1024) or (B * N * K >= (1 << 23))
    if not use_pallas:
        return _cn_update_reference(x, layer_mask)

    # NOTE: K (in_features) is kept whole in every block and statically unrolled in the
    # kernel; this layer's in_features is small (tens), which is the intended regime.
    Bp = _round_up(B, 8)
    Np = _round_up(N, 128)                            # lane-dense output: full, unmasked vst's

    tn = _pick_tile(Np, 512 if tn is None else _round_up(tn, 128), 128)
    tb = _pick_tile(Bp, 256 if tb is None else _round_up(tb, 8), 8)

    # v7x has 2 TensorCores per chip: make sure a 'parallel' grid axis has >= 2 blocks
    # whenever the problem allows it.
    if (Bp // tb) * (Np // tn) < 2:
        if Bp > 8:
            tb = _pick_tile(Bp, max(8, Bp // 2), 8)
        elif Np > 128:
            tn = _pick_tile(Np, max(128, Np // 2), 128)

    chunk = min(chunk, tb)
    if chunk % 8 or tb % chunk:
        chunk = 8

    # Pad only when a dim is not already 8/128-aligned; tile sizes divide the padded
    # dims, so aligned shapes take zero extra HBM passes (no jnp.pad, no output slice).
    xp = x if Bp == B else jnp.pad(x, ((0, Bp - B), (0, 0)))
    mask_t = layer_mask.T                              # (K, N): tiny one-time layout op
    if Np != N:
        mask_t = jnp.pad(mask_t, ((0, 0), (0, Np - N)))   # zero mask -> exact 0 output

    # Batch is the FAST grid axis: the (K, tn) mask tile stays resident across the inner
    # sweep (fetched once per j in total) and only the smaller (tb, K) x tile is replayed.
    grid = (Np // tn, Bp // tb)

    # VMEM: double-buffered I/O tiles + hoisted in-kernel values, clamped well below the
    # 64 MiB physical VMEM of v7x.
    vmem_need = 4 * (2 * tb * K + 2 * K * tn + 2 * tb * tn) + K * tn * 10 + tb * K * 8
    vmem_limit = int(min(32 << 20, max(16 << 20, 2 * vmem_need)))

    kernel = functools.partial(_cn_update_kernel, chunk=chunk,
                               mask_is_binary=_is_binary_mask(layer_mask))

    out = pl.pallas_call(
        kernel,
        out_shape=jax.ShapeDtypeStruct((Bp, Np), x.dtype),
        grid_spec=pltpu.PrefetchScalarGridSpec(
            num_scalar_prefetch=0,
            grid=grid,
            in_specs=[
                pl.BlockSpec((tb, K), lambda j, i: (i, 0)),    # x tile (lane dim = full K)
                pl.BlockSpec((K, tn), lambda j, i: (0, j)),    # mask^T tile (lane dim = N)
            ],
            out_specs=pl.BlockSpec((tb, tn), lambda j, i: (i, j)),
        ),
        compiler_params=pltpu.CompilerParams(
            dimension_semantics=("parallel", "parallel"),
            vmem_limit_bytes=vmem_limit,
        ),
    )(xp, mask_t)

    if Bp != B or Np != N:
        out = out[:B, :N]
    return out


def init_cn_update_params(in_features, out_features, layer_mask):
    """reset_parameters(): weight = ones * layer_mask, bias = zeros.
    Neither is used by forward(); kept only to mirror the PyTorch module."""
    weight = jnp.ones((out_features, in_features), jnp.float32) * layer_mask.astype(jnp.float32)
    bias = jnp.zeros((out_features,), jnp.float32)
    return weight, bias


if __name__ == "__main__":
    batch = 16
    in_features, out_features = 32, 32

    root = jax.random.PRNGKey(0)
    k_x, k_z, k_m, k_x2, k_z2, k_m2, k_s = jax.random.split(root, 7)

    # Fixed binary sparsity pattern (check-node adjacency).
    layer_mask = (jax.random.uniform(k_m, (out_features, in_features)) > 0.5).astype(jnp.float32)
    weight, bias = init_cn_update_params(in_features, out_features, layer_mask)  # unused by forward

    # Input with some exact zeros so both `where` branches are exercised.
    x = jax.random.normal(k_x, (batch, in_features), jnp.float32)
    x = x * (jax.random.uniform(k_z, x.shape) > 0.25).astype(jnp.float32)

    # 1) nominal small case through the wrapper (takes the small-problem fast path).
    y_small = jax.block_until_ready(cn_update_forward(x, layer_mask))
    y_ref = _cn_update_reference(x, layer_mask)
    assert y_small.shape == (batch, out_features)
    assert jnp.allclose(y_small, y_ref, atol=1e-6, rtol=1e-5)

    # 2) force the Pallas kernel on the same small case (exercises N padding + slicing).
    y_pallas = jax.block_until_ready(cn_update_forward(x, layer_mask, use_pallas=True))
    assert y_pallas.shape == (batch, out_features)
    assert jnp.allclose(y_pallas, y_ref, atol=1e-6, rtol=1e-5)

    # 3) non-binary mask values exercise the general exact kernel path.
    mask_nb = layer_mask * (0.5 + jax.random.uniform(k_s, layer_mask.shape))
    y_nb = jax.block_until_ready(cn_update_forward(x, mask_nb, use_pallas=True))
    assert jnp.allclose(y_nb, _cn_update_reference(x, mask_nb), atol=1e-6, rtol=1e-5)

    # 4) a larger tile-aligned case: no pad/slice, >=2 grid blocks, chunked inner loop.
    B2, K2, N2 = 512, 48, 256
    mask2 = (jax.random.uniform(k_m2, (N2, K2)) > 0.6).astype(jnp.float32)
    x2 = jax.random.normal(k_x2, (B2, K2), jnp.float32)
    x2 = x2 * (jax.random.uniform(k_z2, x2.shape) > 0.3).astype(jnp.float32)
    y2 = jax.block_until_ready(cn_update_forward(x2, mask2, use_pallas=True))
    assert jnp.allclose(y2, _cn_update_reference(x2, mask2), atol=1e-5, rtol=1e-5)

    print("KERNEL_OK")
</pallas_src>

<mosaic_0001>
module attributes {stable_mosaic.version = 11 : i64} {
  func.func @_cn_update_kernel(%arg0: i32, %arg1: i32, %arg2: memref<8x32xf32, #tpu.memory_space<vmem>>, %arg3: memref<32x128xf32, #tpu.memory_space<vmem>>, %arg4: memref<8x128xf32, #tpu.memory_space<vmem>>) attributes {dimension_semantics = [#tpu.dimension_semantics<parallel>, #tpu.dimension_semantics<parallel>], iteration_bounds = array<i64: 1, 2>, scalar_prefetch = 0 : i64, scratch_operands = 0 : i64, tpu.core_type = #tpu.core_type<tc>, window_params = [{transform_indices = @transform_0, window_bounds = array<i64: 8, 32>}, {transform_indices = @transform_1, window_bounds = array<i64: 32, 128>}, {transform_indices = @transform_2, window_bounds = array<i64: 8, 128>}]} {
    %c0 = arith.constant 0 : index
    %c0_0 = arith.constant 0 : index
    %0 = vector.load %arg3[%c0, %c0_0] : memref<32x128xf32, #tpu.memory_space<vmem>>, vector<32x128xf32>
    %cst = arith.constant 0.000000e+00 : f32
    %1 = vector.broadcast %cst : f32 to vector<32x128xf32>
    %2 = arith.cmpf one, %0, %1 : vector<32x128xf32>
    %3 = arith.extui %2 : vector<32x128xi1> to vector<32x128xi32>
    %4 = arith.sitofp %3 : vector<32x128xi32> to vector<32x128xf32>
    %5 = arith.truncf %4 : vector<32x128xf32> to vector<32x128xbf16>
    %c0_i32 = arith.constant 0 : i32
    %c8_i32 = arith.constant 8 : i32
    %6 = arith.muli %c0_i32, %c8_i32 : i32
    %7 = tpu.assume_multiple %6, 8 : i32
    %8 = arith.index_cast %7 : i32 to index
    %c0_1 = arith.constant 0 : index
    %9 = vector.load %arg2[%8, %c0_1] : memref<8x32xf32, #tpu.memory_space<vmem>>, vector<8x32xf32>
    %cst_2 = arith.constant 0.000000e+00 : f32
    %10 = vector.broadcast %cst_2 : f32 to vector<8x32xf32>
    %11 = arith.cmpf one, %9, %10 : vector<8x32xf32>
    %cst_3 = arith.constant 1.000000e+00 : f32
    %12 = vector.broadcast %cst_3 : f32 to vector<8x32xf32>
    %13 = arith.select %11, %9, %12 : vector<8x32xi1>, vector<8x32xf32>
    %14 = arith.extui %11 : vector<8x32xi1> to vector<8x32xi32>
    %15 = arith.sitofp %14 : vector<8x32xi32> to vector<8x32xf32>
    %16 = arith.truncf %15 : vector<8x32xf32> to vector<8x32xbf16>
    %cst_4 = arith.constant dense<0.000000e+00> : vector<8x128xf32>
    %17 = tpu.matmul %16, %5, %cst_4 {dimension_numbers = #tpu.dot_dimension_numbers<[1], [0], [0], [1], [0, 0, 1, 1], [], []>} : vector<8x32xbf16>, vector<32x128xbf16>, vector<8x128xf32> -> vector<8x128xf32>
    %cst_5 = arith.constant 1.000000e+00 : f32
    %18 = vector.broadcast %cst_5 : f32 to vector<8x128xf32>
    %19 = vector.extract_strided_slice %2 {offsets = [0, 0], sizes = [1, 128], strides = [1, 1]} : vector<32x128xi1> to vector<1x128xi1>
    %20 = vector.extract_strided_slice %13 {offsets = [0, 0], sizes = [8, 1], strides = [1, 1]} : vector<8x32xf32> to vector<8x1xf32>
    %cst_6 = arith.constant 1.000000e+00 : f32
    %21 = vector.shape_cast %19 : vector<1x128xi1> to vector<1x128xi1>
    %22 = vector.broadcast %21 : vector<1x128xi1> to vector<8x128xi1>
    %23 = vector.shape_cast %20 : vector<8x1xf32> to vector<8x1xf32>
    %24 = vector.broadcast %23 : vector<8x1xf32> to vector<8x128xf32>
    %25 = vector.broadcast %cst_6 : f32 to vector<8x128xf32>
    %26 = arith.select %22, %24, %25 : vector<8x128xi1>, vector<8x128xf32>
    %27 = arith.mulf %18, %26 : vector<8x128xf32>
    %28 = vector.extract_strided_slice %2 {offsets = [1, 0], sizes = [1, 128], strides = [1, 1]} : vector<32x128xi1> to vector<1x128xi1>
    %29 = vector.extract_strided_slice %13 {offsets = [0, 1], sizes = [8, 1], strides = [1, 1]} : vector<8x32xf32> to vector<8x1xf32>
    %cst_7 = arith.constant 1.000000e+00 : f32
    %30 = vector.shape_cast %28 : vector<1x128xi1> to vector<1x128xi1>
    %31 = vector.broadcast %30 : vector<1x128xi1> to vector<8x128xi1>
    %32 = vector.shape_cast %29 : vector<8x1xf32> to vector<8x1xf32>
    %33 = vector.broadcast %32 : vector<8x1xf32> to vector<8x128xf32>
    %34 = vector.broadcast %cst_7 : f32 to vector<8x128xf32>
    %35 = arith.select %31, %33, %34 : vector<8x128xi1>, vector<8x128xf32>
    %36 = arith.mulf %27, %35 : vector<8x128xf32>
    %37 = vector.extract_strided_slice %2 {offsets = [2, 0], sizes = [1, 128], strides = [1, 1]} : vector<32x128xi1> to vector<1x128xi1>
    %38 = vector.extract_strided_slice %13 {offsets = [0, 2], sizes = [8, 1], strides = [1, 1]} : vector<8x32xf32> to vector<8x1xf32>
    %cst_8 = arith.constant 1.000000e+00 : f32
    %39 = vector.shape_cast %37 : vector<1x128xi1> to vector<1x128xi1>
    %40 = vector.broadcast %39 : vector<1x128xi1> to vector<8x128xi1>
    %41 = vector.shape_cast %38 : vector<8x1xf32> to vector<8x1xf32>
    %42 = vector.broadcast %41 : vector<8x1xf32> to vector<8x128xf32>
    %43 = vector.broadcast %cst_8 : f32 to vector<8x128xf32>
    %44 = arith.select %40, %42, %43 : vector<8x128xi1>, vector<8x128xf32>
    %45 = arith.mulf %36, %44 : vector<8x128xf32>
    %46 = vector.extract_strided_slice %2 {offsets = [3, 0], sizes = [1, 128], strides = [1, 1]} : vector<32x128xi1> to vector<1x128xi1>
    %47 = vector.extract_strided_slice %13 {offsets = [0, 3], sizes = [8, 1], strides = [1, 1]} : vector<8x32xf32> to vector<8x1xf32>
    %cst_9 = arith.constant 1.000000e+00 : f32
    %48 = vector.shape_cast %46 : vector<1x128xi1> to vector<1x128xi1>
    %49 = vector.broadcast %48 : vector<1x128xi1> to vector<8x128xi1>
    %50 = vector.shape_cast %47 : vector<8x1xf32> to vector<8x1xf32>
    %51 = vector.broadcast %50 : vector<8x1xf32> to vector<8x128xf32>
    %52 = vector.broadcast %cst_9 : f32 to vector<8x128xf32>
    %53 = arith.select %49, %51, %52 : vector<8x128xi1>, vector<8x128xf32>
    %54 = arith.mulf %45, %53 : vector<8x128xf32>
    %55 = vector.extract_strided_slice %2 {offsets = [4, 0], sizes = [1, 128], strides = [1, 1]} : vector<32x128xi1> to vector<1x128xi1>
    %56 = vector.extract_strided_slice %13 {offsets = [0, 4], sizes = [8, 1], strides = [1, 1]} : vector<8x32xf32> to vector<8x1xf32>
    %cst_10 = arith.constant 1.000000e+00 : f32
    %57 = vector.shape_cast %55 : vector<1x128xi1> to vector<1x128xi1>
    %58 = vector.broadcast %57 : vector<1x128xi1> to vector<8x128xi1>
    %59 = vector.shape_cast %56 : vector<8x1xf32> to vector<8x1xf32>
    %60 = vector.broadcast %59 : vector<8x1xf32> to vector<8x128xf32>
    %61 = vector.broadcast %cst_10 : f32 to vector<8x128xf32>
    %62 = arith.select %58, %60, %61 : vector<8x128xi1>, vector<8x128xf32>
    %63 = arith.mulf %54, %62 : vector<8x128xf32>
    %64 = vector.extract_strided_slice %2 {offsets = [5, 0], sizes = [1, 128], strides = [1, 1]} : vector<32x128xi1> to vector<1x128xi1>
    %65 = vector.extract_strided_slice %13 {offsets = [0, 5], sizes = [8, 1], strides = [1, 1]} : vector<8x32xf32> to vector<8x1xf32>
    %cst_11 = arith.constant 1.000000e+00 : f32
    %66 = vector.shape_cast %64 : vector<1x128xi1> to vector<1x128xi1>
    %67 = vector.broadcast %66 : vector<1x128xi1> to vector<8x128xi1>
    %68 = vector.shape_cast %65 : vector<8x1xf32> to vector<8x1xf32>
    %69 = vector.broadcast %68 : vector<8x1xf32> to vector<8x128xf32>
    %70 = vector.broadcast %cst_11 : f32 to vector<8x128xf32>
    %71 = arith.select %67, %69, %70 : vector<8x128xi1>, vector<8x128xf32>
    %72 = arith.mulf %63, %71 : vector<8x128xf32>
    %73 = vector.extract_strided_slice %2 {offsets = [6, 0], sizes = [1, 128], strides = [1, 1]} : vector<32x128xi1> to vector<1x128xi1>
    %74 = vector.extract_strided_slice %13 {offsets = [0, 6], sizes = [8, 1], strides = [1, 1]} : vector<8x32xf32> to vector<8x1xf32>
    %cst_12 = arith.constant 1.000000e+00 : f32
    %75 = vector.shape_cast %73 : vector<1x128xi1> to vector<1x128xi1>
    %76 = vector.broadcast %75 : vector<1x128xi1> to vector<8x128xi1>
    %77 = vector.shape_cast %74 : vector<8x1xf32> to vector<8x1xf32>
    %78 = vector.broadcast %77 : vector<8x1xf32> to vector<8x128xf32>
    %79 = vector.broadcast %cst_12 : f32 to vector<8x128xf32>
    %80 = arith.select %76, %78, %79 : vector<8x128xi1>, vector<8x128xf32>
    %81 = arith.mulf %72, %80 : vector<8x128xf32>
    %82 = vector.extract_strided_slice %2 {offsets = [7, 0], sizes = [1, 128], strides = [1, 1]} : vector<32x128xi1> to vector<1x128xi1>
    %83 = vector.extract_strided_slice %13 {offsets = [0, 7], sizes = [8, 1], strides = [1, 1]} : vector<8x32xf32> to vector<8x1xf32>
    %cst_13 = arith.constant 1.000000e+00 : f32
    %84 = vector.shape_cast %82 : vector<1x128xi1> to vector<1x128xi1>
    %85 = vector.broadcast %84 : vector<1x128xi1> to vector<8x128xi1>
    %86 = vector.shape_cast %83 : vector<8x1xf32> to vector<8x1xf32>
    %87 = vector.broadcast %86 : vector<8x1xf32> to vector<8x128xf32>
    %88 = vector.broadcast %cst_13 : f32 to vector<8x128xf32>
    %89 = arith.select %85, %87, %88 : vector<8x128xi1>, vector<8x128xf32>
    %90 = arith.mulf %81, %89 : vector<8x128xf32>
    %91 = vector.extract_strided_slice %2 {offsets = [8, 0], sizes = [1, 128], strides = [1, 1]} : vector<32x128xi1> to vector<1x128xi1>
    %92 = vector.extract_strided_slice %13 {offsets = [0, 8], sizes = [8, 1], strides = [1, 1]} : vector<8x32xf32> to vector<8x1xf32>
    %cst_14 = arith.constant 1.000000e+00 : f32
    %93 = vector.shape_cast %91 : vector<1x128xi1> to vector<1x128xi1>
    %94 = vector.broadcast %93 : vector<1x128xi1> to vector<8x128xi1>
    %95 = vector.shape_cast %92 : vector<8x1xf32> to vector<8x1xf32>
    %96 = vector.broadcast %95 : vector<8x1xf32> to vector<8x128xf32>
    %97 = vector.broadcast %cst_14 : f32 to vector<8x128xf32>
    %98 = arith.select %94, %96, %97 : vector<8x128xi1>, vector<8x128xf32>
    %99 = arith.mulf %90, %98 : vector<8x128xf32>
    %100 = vector.extract_strided_slice %2 {offsets = [9, 0], sizes = [1, 128], strides = [1, 1]} : vector<32x128xi1> to vector<1x128xi1>
    %101 = vector.extract_strided_slice %13 {offsets = [0, 9], sizes = [8, 1], strides = [1, 1]} : vector<8x32xf32> to vector<8x1xf32>
    %cst_15 = arith.constant 1.000000e+00 : f32
    %102 = vector.shape_cast %100 : vector<1x128xi1> to vector<1x128xi1>
    %103 = vector.broadcast %102 : vector<1x128xi1> to vector<8x128xi1>
    %104 = vector.shape_cast %101 : vector<8x1xf32> to vector<8x1xf32>
    %105 = vector.broadcast %104 : vector<8x1xf32> to vector<8x128xf32>
    %106 = vector.broadcast %cst_15 : f32 to vector<8x128xf32>
    %107 = arith.select %103, %105, %106 : vector<8x128xi1>, vector<8x128xf32>
    %108 = arith.mulf %99, %107 : vector<8x128xf32>
    %109 = vector.extract_strided_slice %2 {offsets = [10, 0], sizes = [1, 128], strides = [1, 1]} : vector<32x128xi1> to vector<1x128xi1>
    %110 = vector.extract_strided_slice %13 {offsets = [0, 10], sizes = [8, 1], strides = [1, 1]} : vector<8x32xf32> to vector<8x1xf32>
    %cst_16 = arith.constant 1.000000e+00 : f32
    %111 = vector.shape_cast %109 : vector<1x128xi1> to vector<1x128xi1>
    %112 = vector.broadcast %111 : vector<1x128xi1> to vector<8x128xi1>
    %113 = vector.shape_cast %110 : vector<8x1xf32> to vector<8x1xf32>
    %114 = vector.broadcast %113 : vector<8x1xf32> to vector<8x128xf32>
    %115 = vector.broadcast %cst_16 : f32 to vector<8x128xf32>
    %116 = arith.select %112, %114, %115 : vector<8x128xi1>, vector<8x128xf32>
    %117 = arith.mulf %108, %116 : vector<8x128xf32>
    %118 = vector.extract_strided_slice %2 {offsets = [11, 0], sizes = [1, 128], strides = [1, 1]} : vector<32x128xi1> to vector<1x128xi1>
    %119 = vector.extract_strided_slice %13 {offsets = [0, 11], sizes = [8, 1], strides = [1, 1]} : vector<8x32xf32> to vector<8x1xf32>
    %cst_17 = arith.constant 1.000000e+00 : f32
    %120 = vector.shape_cast %118 : vector<1x128xi1> to vector<1x128xi1>
    %121 = vector.broadcast %120 : vector<1x128xi1> to vector<8x128xi1>
    %122 = vector.shape_cast %119 : vector<8x1xf32> to vector<8x1xf32>
    %123 = vector.broadcast %122 : vector<8x1xf32> to vector<8x128xf32>
    %124 = vector.broadcast %cst_17 : f32 to vector<8x128xf32>
    %125 = arith.select %121, %123, %124 : vector<8x128xi1>, vector<8x128xf32>
    %126 = arith.mulf %117, %125 : vector<8x128xf32>
    %127 = vector.extract_strided_slice %2 {offsets = [12, 0], sizes = [1, 128], strides = [1, 1]} : vector<32x128xi1> to vector<1x128xi1>
    %128 = vector.extract_strided_slice %13 {offsets = [0, 12], sizes = [8, 1], strides = [1, 1]} : vector<8x32xf32> to vector<8x1xf32>
    %cst_18 = arith.constant 1.000000e+00 : f32
    %129 = vector.shape_cast %127 : vector<1x128xi1> to vector<1x128xi1>
    %130 = vector.broadcast %129 : vector<1x128xi1> to vector<8x128xi1>
    %131 = vector.shape_cast %128 : vector<8x1xf32> to vector<8x1xf32>
    %132 = vector.broadcast %131 : vector<8x1xf32> to vector<8x128xf32>
    %133 = vector.broadcast %cst_18 : f32 to vector<8x128xf32>
    %134 = arith.select %130, %132, %133 : vector<8x128xi1>, vector<8x128xf32>
    %135 = arith.mulf %126, %134 : vector<8x128xf32>
    %136 = vector.extract_strided_slice %2 {offsets = [13, 0], sizes = [1, 128], strides = [1, 1]} : vector<32x128xi1> to vector<1x128xi1>
    %137 = vector.extract_strided_slice %13 {offsets = [0, 13], sizes = [8, 1], strides = [1, 1]} : vector<8x32xf32> to vector<8x1xf32>
    %cst_19 = arith.constant 1.000000e+00 : f32
    %138 = vector.shape_cast %136 : vector<1x128xi1> to vector<1x128xi1>
    %139 = vector.broadcast %138 : vector<1x128xi1> to vector<8x128xi1>
    %140 = vector.shape_cast %137 : vector<8x1xf32> to vector<8x1xf32>
    %141 = vector.broadcast %140 : vector<8x1xf32> to vector<8x128xf32>
    %142 = vector.broadcast %cst_19 : f32 to vector<8x128xf32>
    %143 = arith.select %139, %141, %142 : vector<8x128xi1>, vector<8x128xf32>
    %144 = arith.mulf %135, %143 : vector<8x128xf32>
    %145 = vector.extract_strided_slice %2 {offsets = [14, 0], sizes = [1, 128], strides = [1, 1]} : vector<32x128xi1> to vector<1x128xi1>
    %146 = vector.extract_strided_slice %13 {offsets = [0, 14], sizes = [8, 1], strides = [1, 1]} : vector<8x32xf32> to vector<8x1xf32>
    %cst_20 = arith.constant 1.000000e+00 : f32
    %147 = vector.shape_cast %145 : vector<1x128xi1> to vector<1x128xi1>
    %148 = vector.broadcast %147 : vector<1x128xi1> to vector<8x128xi1>
    %149 = vector.shape_cast %146 : vector<8x1xf32> to vector<8x1xf32>
    %150 = vector.broadcast %149 : vector<8x1xf32> to vector<8x128xf32>
    %151 = vector.broadcast %cst_20 : f32 to vector<8x128xf32>
    %152 = arith.select %148, %150, %151 : vector<8x128xi1>, vector<8x128xf32>
    %153 = arith.mulf %144, %152 : vector<8x128xf32>
    %154 = vector.extract_strided_slice %2 {offsets = [15, 0], sizes = [1, 128], strides = [1, 1]} : vector<32x128xi1> to vector<1x128xi1>
    %155 = vector.extract_strided_slice %13 {offsets = [0, 15], sizes = [8, 1], strides = [1, 1]} : vector<8x32xf32> to vector<8x1xf32>
    %cst_21 = arith.constant 1.000000e+00 : f32
    %156 = vector.shape_cast %154 : vector<1x128xi1> to vector<1x128xi1>
    %157 = vector.broadcast %156 : vector<1x128xi1> to vector<8x128xi1>
    %158 = vector.shape_cast %155 : vector<8x1xf32> to vector<8x1xf32>
    %159 = vector.broadcast %158 : vector<8x1xf32> to vector<8x128xf32>
    %160 = vector.broadcast %cst_21 : f32 to vector<8x128xf32>
    %161 = arith.select %157, %159, %160 : vector<8x128xi1>, vector<8x128xf32>
    %162 = arith.mulf %153, %161 : vector<8x128xf32>
    %163 = vector.extract_strided_slice %2 {offsets = [16, 0], sizes = [1, 128], strides = [1, 1]} : vector<32x128xi1> to vector<1x128xi1>
    %164 = vector.extract_strided_slice %13 {offsets = [0, 16], sizes = [8, 1], strides = [1, 1]} : vector<8x32xf32> to vector<8x1xf32>
    %cst_22 = arith.constant 1.000000e+00 : f32
    %165 = vector.shape_cast %163 : vector<1x128xi1> to vector<1x128xi1>
    %166 = vector.broadcast %165 : vector<1x128xi1> to vector<8x128xi1>
    %167 = vector.shape_cast %164 : vector<8x1xf32> to vector<8x1xf32>
    %168 = vector.broadcast %167 : vector<8x1xf32> to vector<8x128xf32>
    %169 = vector.broadcast %cst_22 : f32 to vector<8x128xf32>
    %170 = arith.select %166, %168, %169 : vector<8x128xi1>, vector<8x128xf32>
    %171 = arith.mulf %162, %170 : vector<8x128xf32>
    %172 = vector.extract_strided_slice %2 {offsets = [17, 0], sizes = [1, 128], strides = [1, 1]} : vector<32x128xi1> to vector<1x128xi1>
    %173 = vector.extract_strided_slice %13 {offsets = [0, 17], sizes = [8, 1], strides = [1, 1]} : vector<8x32xf32> to vector<8x1xf32>
    %cst_23 = arith.constant 1.000000e+00 : f32
    %174 = vector.shape_cast %172 : vector<1x128xi1> to vector<1x128xi1>
    %175 = vector.broadcast %174 : vector<1x128xi1> to vector<8x128xi1>
    %176 = vector.shape_cast %173 : vector<8x1xf32> to vector<8x1xf32>
    %177 = vector.broadcast %176 : vector<8x1xf32> to vector<8x128xf32>
    %178 = vector.broadcast %cst_23 : f32 to vector<8x128xf32>
    %179 = arith.select %175, %177, %178 : vector<8x128xi1>, vector<8x128xf32>
    %180 = arith.mulf %171, %179 : vector<8x128xf32>
    %181 = vector.extract_strided_slice %2 {offsets = [18, 0], sizes = [1, 128], strides = [1, 1]} : vector<32x128xi1> to vector<1x128xi1>
    %182 = vector.extract_strided_slice %13 {offsets = [0, 18], sizes = [8, 1], strides = [1, 1]} : vector<8x32xf32> to vector<8x1xf32>
    %cst_24 = arith.constant 1.000000e+00 : f32
    %183 = vector.shape_cast %181 : vector<1x128xi1> to vector<1x128xi1>
    %184 = vector.broadcast %183 : vector<1x128xi1> to vector<8x128xi1>
    %185 = vector.shape_cast %182 : vector<8x1xf32> to vector<8x1xf32>
    %186 = vector.broadcast %185 : vector<8x1xf32> to vector<8x128xf32>
    %187 = vector.broadcast %cst_24 : f32 to vector<8x128xf32>
    %188 = arith.select %184, %186, %187 : vector<8x128xi1>, vector<8x128xf32>
    %189 = arith.mulf %180, %188 : vector<8x128xf32>
    %190 = vector.extract_strided_slice %2 {offsets = [19, 0], sizes = [1, 128], strides = [1, 1]} : vector<32x128xi1> to vector<1x128xi1>
    %191 = vector.extract_strided_slice %13 {offsets = [0, 19], sizes = [8, 1], strides = [1, 1]} : vector<8x32xf32> to vector<8x1xf32>
    %cst_25 = arith.constant 1.000000e+00 : f32
    %192 = vector.shape_cast %190 : vector<1x128xi1> to vector<1x128xi1>
    %193 = vector.broadcast %192 : vector<1x128xi1> to vector<8x128xi1>
    %194 = vector.shape_cast %191 : vector<8x1xf32> to vector<8x1xf32>
    %195 = vector.broadcast %194 : vector<8x1xf32> to vector<8x128xf32>
    %196 = vector.broadcast %cst_25 : f32 to vector<8x128xf32>
    %197 = arith.select %193, %195, %196 : vector<8x128xi1>, vector<8x128xf32>
    %198 = arith.mulf %189, %197 : vector<8x128xf32>
    %199 = vector.extract_strided_slice %2 {offsets = [20, 0], sizes = [1, 128], strides = [1, 1]} : vector<32x128xi1> to vector<1x128xi1>
    %200 = vector.extract_strided_slice %13 {offsets = [0, 20], sizes = [8, 1], strides = [1, 1]} : vector<8x32xf32> to vector<8x1xf32>
    %cst_26 = arith.constant 1.000000e+00 : f32
    %201 = vector.shape_cast %199 : vector<1x128xi1> to vector<1x128xi1>
    %202 = vector.broadcast %201 : vector<1x128xi1> to vector<8x128xi1>
    %203 = vector.shape_cast %200 : vector<8x1xf32> to vector<8x1xf32>
    %204 = vector.broadcast %203 : vector<8x1xf32> to vector<8x128xf32>
    %205 = vector.broadcast %cst_26 : f32 to vector<8x128xf32>
    %206 = arith.select %202, %204, %205 : vector<8x128xi1>, vector<8x128xf32>
    %207 = arith.mulf %198, %206 : vector<8x128xf32>
    %208 = vector.extract_strided_slice %2 {offsets = [21, 0], sizes = [1, 128], strides = [1, 1]} : vector<32x128xi1> to vector<1x128xi1>
    %209 = vector.extract_strided_slice %13 {offsets = [0, 21], sizes = [8, 1], strides = [1, 1]} : vector<8x32xf32> to vector<8x1xf32>
    %cst_27 = arith.constant 1.000000e+00 : f32
    %210 = vector.shape_cast %208 : vector<1x128xi1> to vector<1x128xi1>
    %211 = vector.broadcast %210 : vector<1x128xi1> to vector<8x128xi1>
    %212 = vector.shape_cast %209 : vector<8x1xf32> to vector<8x1xf32>
    %213 = vector.broadcast %212 : vector<8x1xf32> to vector<8x128xf32>
    %214 = vector.broadcast %cst_27 : f32 to vector<8x128xf32>
    %215 = arith.select %211, %213, %214 : vector<8x128xi1>, vector<8x128xf32>
    %216 = arith.mulf %207, %215 : vector<8x128xf32>
    %217 = vector.extract_strided_slice %2 {offsets = [22, 0], sizes = [1, 128], strides = [1, 1]} : vector<32x128xi1> to vector<1x128xi1>
    %218 = vector.extract_strided_slice %13 {offsets = [0, 22], sizes = [8, 1], strides = [1, 1]} : vector<8x32xf32> to vector<8x1xf32>
    %cst_28 = arith.constant 1.000000e+00 : f32
    %219 = vector.shape_cast %217 : vector<1x128xi1> to vector<1x128xi1>
    %220 = vector.broadcast %219 : vector<1x128xi1> to vector<8x128xi1>
    %221 = vector.shape_cast %218 : vector<8x1xf32> to vector<8x1xf32>
    %222 = vector.broadcast %221 : vector<8x1xf32> to vector<8x128xf32>
    %223 = vector.broadcast %cst_28 : f32 to vector<8x128xf32>
    %224 = arith.select %220, %222, %223 : vector<8x128xi1>, vector<8x128xf32>
    %225 = arith.mulf %216, %224 : vector<8x128xf32>
    %226 = vector.extract_strided_slice %2 {offsets = [23, 0], sizes = [1, 128], strides = [1, 1]} : vector<32x128xi1> to vector<1x128xi1>
    %227 = vector.extract_strided_slice %13 {offsets = [0, 23], sizes = [8, 1], strides = [1, 1]} : vector<8x32xf32> to vector<8x1xf32>
    %cst_29 = arith.constant 1.000000e+00 : f32
    %228 = vector.shape_cast %226 : vector<1x128xi1> to vector<1x128xi1>
    %229 = vector.broadcast %228 : vector<1x128xi1> to vector<8x128xi1>
    %230 = vector.shape_cast %227 : vector<8x1xf32> to vector<8x1xf32>
    %231 = vector.broadcast %230 : vector<8x1xf32> to vector<8x128xf32>
    %232 = vector.broadcast %cst_29 : f32 to vector<8x128xf32>
    %233 = arith.select %229, %231, %232 : vector<8x128xi1>, vector<8x128xf32>
    %234 = arith.mulf %225, %233 : vector<8x128xf32>
    %235 = vector.extract_strided_slice %2 {offsets = [24, 0], sizes = [1, 128], strides = [1, 1]} : vector<32x128xi1> to vector<1x128xi1>
    %236 = vector.extract_strided_slice %13 {offsets = [0, 24], sizes = [8, 1], strides = [1, 1]} : vector<8x32xf32> to vector<8x1xf32>
    %cst_30 = arith.constant 1.000000e+00 : f32
    %237 = vector.shape_cast %235 : vector<1x128xi1> to vector<1x128xi1>
    %238 = vector.broadcast %237 : vector<1x128xi1> to vector<8x128xi1>
    %239 = vector.shape_cast %236 : vector<8x1xf32> to vector<8x1xf32>
    %240 = vector.broadcast %239 : vector<8x1xf32> to vector<8x128xf32>
    %241 = vector.broadcast %cst_30 : f32 to vector<8x128xf32>
    %242 = arith.select %238, %240, %241 : vector<8x128xi1>, vector<8x128xf32>
    %243 = arith.mulf %234, %242 : vector<8x128xf32>
    %244 = vector.extract_strided_slice %2 {offsets = [25, 0], sizes = [1, 128], strides = [1, 1]} : vector<32x128xi1> to vector<1x128xi1>
    %245 = vector.extract_strided_slice %13 {offsets = [0, 25], sizes = [8, 1], strides = [1, 1]} : vector<8x32xf32> to vector<8x1xf32>
    %cst_31 = arith.constant 1.000000e+00 : f32
    %246 = vector.shape_cast %244 : vector<1x128xi1> to vector<1x128xi1>
    %247 = vector.broadcast %246 : vector<1x128xi1> to vector<8x128xi1>
    %248 = vector.shape_cast %245 : vector<8x1xf32> to vector<8x1xf32>
    %249 = vector.broadcast %248 : vector<8x1xf32> to vector<8x128xf32>
    %250 = vector.broadcast %cst_31 : f32 to vector<8x128xf32>
    %251 = arith.select %247, %249, %250 : vector<8x128xi1>, vector<8x128xf32>
    %252 = arith.mulf %243, %251 : vector<8x128xf32>
    %253 = vector.extract_strided_slice %2 {offsets = [26, 0], sizes = [1, 128], strides = [1, 1]} : vector<32x128xi1> to vector<1x128xi1>
    %254 = vector.extract_strided_slice %13 {offsets = [0, 26], sizes = [8, 1], strides = [1, 1]} : vector<8x32xf32> to vector<8x1xf32>
    %cst_32 = arith.constant 1.000000e+00 : f32
    %255 = vector.shape_cast %253 : vector<1x128xi1> to vector<1x128xi1>
    %256 = vector.broadcast %255 : vector<1x128xi1> to vector<8x128xi1>
    %257 = vector.shape_cast %254 : vector<8x1xf32> to vector<8x1xf32>
    %258 = vector.broadcast %257 : vector<8x1xf32> to vector<8x128xf32>
    %259 = vector.broadcast %cst_32 : f32 to vector<8x128xf32>
    %260 = arith.select %256, %258, %259 : vector<8x128xi1>, vector<8x128xf32>
    %261 = arith.mulf %252, %260 : vector<8x128xf32>
    %262 = vector.extract_strided_slice %2 {offsets = [27, 0], sizes = [1, 128], strides = [1, 1]} : vector<32x128xi1> to vector<1x128xi1>
    %263 = vector.extract_strided_slice %13 {offsets = [0, 27], sizes = [8, 1], strides = [1, 1]} : vector<8x32xf32> to vector<8x1xf32>
    %cst_33 = arith.constant 1.000000e+00 : f32
    %264 = vector.shape_cast %262 : vector<1x128xi1> to vector<1x128xi1>
    %265 = vector.broadcast %264 : vector<1x128xi1> to vector<8x128xi1>
    %266 = vector.shape_cast %263 : vector<8x1xf32> to vector<8x1xf32>
    %267 = vector.broadcast %266 : vector<8x1xf32> to vector<8x128xf32>
    %268 = vector.broadcast %cst_33 : f32 to vector<8x128xf32>
    %269 = arith.select %265, %267, %268 : vector<8x128xi1>, vector<8x128xf32>
    %270 = arith.mulf %261, %269 : vector<8x128xf32>
    %271 = vector.extract_strided_slice %2 {offsets = [28, 0], sizes = [1, 128], strides = [1, 1]} : vector<32x128xi1> to vector<1x128xi1>
    %272 = vector.extract_strided_slice %13 {offsets = [0, 28], sizes = [8, 1], strides = [1, 1]} : vector<8x32xf32> to vector<8x1xf32>
    %cst_34 = arith.constant 1.000000e+00 : f32
    %273 = vector.shape_cast %271 : vector<1x128xi1> to vector<1x128xi1>
    %274 = vector.broadcast %273 : vector<1x128xi1> to vector<8x128xi1>
    %275 = vector.shape_cast %272 : vector<8x1xf32> to vector<8x1xf32>
    %276 = vector.broadcast %275 : vector<8x1xf32> to vector<8x128xf32>
    %277 = vector.broadcast %cst_34 : f32 to vector<8x128xf32>
    %278 = arith.select %274, %276, %277 : vector<8x128xi1>, vector<8x128xf32>
    %279 = arith.mulf %270, %278 : vector<8x128xf32>
    %280 = vector.extract_strided_slice %2 {offsets = [29, 0], sizes = [1, 128], strides = [1, 1]} : vector<32x128xi1> to vector<1x128xi1>
    %281 = vector.extract_strided_slice %13 {offsets = [0, 29], sizes = [8, 1], strides = [1, 1]} : vector<8x32xf32> to vector<8x1xf32>
    %cst_35 = arith.constant 1.000000e+00 : f32
    %282 = vector.shape_cast %280 : vector<1x128xi1> to vector<1x128xi1>
    %283 = vector.broadcast %282 : vector<1x128xi1> to vector<8x128xi1>
    %284 = vector.shape_cast %281 : vector<8x1xf32> to vector<8x1xf32>
    %285 = vector.broadcast %284 : vector<8x1xf32> to vector<8x128xf32>
    %286 = vector.broadcast %cst_35 : f32 to vector<8x128xf32>
    %287 = arith.select %283, %285, %286 : vector<8x128xi1>, vector<8x128xf32>
    %288 = arith.mulf %279, %287 : vector<8x128xf32>
    %289 = vector.extract_strided_slice %2 {offsets = [30, 0], sizes = [1, 128], strides = [1, 1]} : vector<32x128xi1> to vector<1x128xi1>
    %290 = vector.extract_strided_slice %13 {offsets = [0, 30], sizes = [8, 1], strides = [1, 1]} : vector<8x32xf32> to vector<8x1xf32>
    %cst_36 = arith.constant 1.000000e+00 : f32
    %291 = vector.shape_cast %289 : vector<1x128xi1> to vector<1x128xi1>
    %292 = vector.broadcast %291 : vector<1x128xi1> to vector<8x128xi1>
    %293 = vector.shape_cast %290 : vector<8x1xf32> to vector<8x1xf32>
    %294 = vector.broadcast %293 : vector<8x1xf32> to vector<8x128xf32>
    %295 = vector.broadcast %cst_36 : f32 to vector<8x128xf32>
    %296 = arith.select %292, %294, %295 : vector<8x128xi1>, vector<8x128xf32>
    %297 = arith.mulf %288, %296 : vector<8x128xf32>
    %298 = vector.extract_strided_slice %2 {offsets = [31, 0], sizes = [1, 128], strides = [1, 1]} : vector<32x128xi1> to vector<1x128xi1>
    %299 = vector.extract_strided_slice %13 {offsets = [0, 31], sizes = [8, 1], strides = [1, 1]} : vector<8x32xf32> to vector<8x1xf32>
    %cst_37 = arith.constant 1.000000e+00 : f32
    %300 = vector.shape_cast %298 : vector<1x128xi1> to vector<1x128xi1>
    %301 = vector.broadcast %300 : vector<1x128xi1> to vector<8x128xi1>
    %302 = vector.shape_cast %299 : vector<8x1xf32> to vector<8x1xf32>
    %303 = vector.broadcast %302 : vector<8x1xf32> to vector<8x128xf32>
    %304 = vector.broadcast %cst_37 : f32 to vector<8x128xf32>
    %305 = arith.select %301, %303, %304 : vector<8x128xi1>, vector<8x128xf32>
    %306 = arith.mulf %297, %305 : vector<8x128xf32>
    %cst_38 = arith.constant 0.000000e+00 : f32
    %307 = vector.broadcast %cst_38 : f32 to vector<8x128xf32>
    %308 = arith.cmpf ogt, %17, %307 : vector<8x128xf32>
    %cst_39 = arith.constant 0.000000e+00 : f32
    %309 = vector.broadcast %cst_39 : f32 to vector<8x128xf32>
    %310 = arith.select %308, %306, %309 : vector<8x128xi1>, vector<8x128xf32>
    %311 = arith.index_cast %7 : i32 to index
    %c0_40 = arith.constant 0 : index
    %312 = vector.load %arg4[%311, %c0_40] : memref<8x128xf32, #tpu.memory_space<vmem>>, vector<8x128xf32>
    tpu.vector_store %arg4[%311, %c0_40], %310 {strides = array<i32>} : memref<8x128xf32, #tpu.memory_space<vmem>>, vector<8x128xf32>,
    %c1_i32 = arith.constant 1 : i32
    return
  }
  func.func @transform_0(%arg0: i32, %arg1: i32) -> (i32, i32) {
    %c0_i32 = arith.constant 0 : i32
    %c0_i32_0 = arith.constant 0 : i32
    return %arg1, %c0_i32 : i32, i32
  }
  func.func @transform_1(%arg0: i32, %arg1: i32) -> (i32, i32) {
    %c0_i32 = arith.constant 0 : i32
    %c0_i32_0 = arith.constant 0 : i32
    return %c0_i32, %arg0 : i32, i32
  }
  func.func @transform_2(%arg0: i32, %arg1: i32) -> (i32, i32) {
    %c0_i32 = arith.constant 0 : i32
    return %arg1, %arg0 : i32, i32
  }
}

</mosaic_0001>

<llo_original>
// kernel: tpu_custom_call.1
$region0: #{tpu_custom_call.1}
  #allocation0 [shape = 'u32[]', space=smem, size = 0x4, offset = 0x4, fixed_abs, tag = 'smem constant byte address 0x4 - core index']
  #allocation1 [shape = 'u32[144,128]{1,0:T(1,128)}', space=vmem, size = 0x12000, scoped, tag = 'internal scratch']
  %s0 = inlined_call_operand.hbm [shape: f32[16,32], index: 0, kind: input, shape index: {}]
  %s1 = inlined_call_operand.hbm [shape: f32[32,128], index: 1, kind: input, shape index: {}]
  %s2 = inlined_call_operand.hbm [shape: f32[16,128], index: 2, kind: output, shape index: {}]
  %s3 = sld [smem:[#allocation0]]
  $region49: #{tpu_custom_call.1} parent=0
    _
  %s5 = ssub.s32 1, %s3
  %s6 = scalar_select 0, %s5, %s3
  $region1: #{tpu_custom_call.1} parent=0
    #allocation2 [shape = 'u8[8192]{0}', space=vmem, size = 0x2000, scoped, tag = 'input window, operand 0']
    #allocation3 [shape = 's32[2]{0}', space=sflag, size = 0x8, scoped, tag = 'scoped memory for tpu_custom_call.1']
    #allocation4 [shape = 's32[2]{0}', space=sflag, size = 0x8, scoped, tag = 'scoped memory for tpu_custom_call.1']
    #allocation5 [shape = 'u8[16384]{0}', space=vmem, size = 0x4000, scoped, tag = 'input window, operand 1, single buffered']
    #allocation6 [shape = 's32[1]{0}', space=sflag, size = 0x4, scoped, tag = 'scoped memory for tpu_custom_call.1']
    #allocation7 [shape = 'u8[8192]{0}', space=vmem, size = 0x2000, scoped, tag = 'output window, operand 0']
    %7 = vsyncpa [#allocation3], 0
    %s8 = scalar_lea.sflag [#allocation3], 1
    %9 = vsyncpa %s8, 0
    %10 = vsyncpa [#allocation6], 0
    %11 = vsyncpa [#allocation4], 0
    %s12 = scalar_lea.sflag [#allocation4], 1
    %13 = vsyncpa %s12, 0
    loop: start=0, step=1, limit=4
    $region2: #{tpu_custom_call.1} parent=1 // loop_pre_header
      _
    $region3: #{tpu_custom_call.1} parent=1 // loop_header
      %s15 = sphi 0, %s19
      %p16 = scmp.ge.s32.totalorder %s15, 4
      %s22 = sphi 0, %s34
      %s23 = sphi 0, %s30
      %s24 = sphi 0, %s22
      %s25 = sphi 0, %s23
      %s26 = sphi 0, %s24
      %s27 = sphi 0, %s25
      %s37 = sphi 0, %s39
      %s40 = sphi 0, %s37
      %s41 = sphi 0, %s40
      %s57 = sphi 0, %s41
      %s63 = sphi 0, %s65
      %s66 = sphi 0, %s63
      %s67 = sphi 0, %s66
      %s83 = sphi 0, %s67
      %s91 = sphi 0, %s93
      %s94 = sphi 0, %s91
      %s95 = sphi 0, %s94
      %s111 = sphi 0, %s95
    $region4: #{tpu_custom_call.1} parent=1 // loop_header_branch
      %18 = sbr.rel (%p16) target = $region8
    $region5: #{tpu_custom_call.1} parent=1 // loop_body
      %s20 = ssub.s32 %s15, 1
      %s21 = ssub.s32 %s15, 2
      %s28 = sadd.s32 1, %s23
      %p29 = scmp.ge.s32.totalorder %s28, 2
      %s30 = scalar_select %p29, 0, %s28
      %s31 = sadd.s32 1, %s22
      %s32 = scalar_select %p29, %s31, %s22
      %p33 = scmp.ge.s32.totalorder %s32, 1
      %s34 = scalar_select %p33, 0, %s32
      %s35 = ssub.s32 %s23, %s30
      %p36 = scmp.eq.s32.totalorder %s35, 0
      %s38 = sadd.s32 %s37, 1
      %s39 = scalar_select %p36, %s37, %s38
      %p42 = pneg %p36
      %p43 = scmp.eq.s32.totalorder %s15, 1
      %p44 = por %p42, %p43
      %p45 = scmp.ne.s32.totalorder %s37, %s40
      %p46 = scmp.eq.s32.totalorder %s15, 0
      %p47 = por %p45, %p46
      %p48 = scmp.ne.s32.totalorder %s37, %s40
      %p49 = scmp.eq.s32.totalorder %s20, 1
      %p50 = por %p48, %p49
      %p51 = scmp.ne.s32.totalorder %s40, %s41
      %p52 = scmp.eq.s32.totalorder %s20, 0
      %p53 = por %p51, %p52
      %p54 = scmp.ne.s32.totalorder %s40, %s41
      %p55 = scmp.eq.s32.totalorder %s21, 1
      %p56 = por %p54, %p55
      %p58 = scmp.ne.s32.totalorder %s41, %s57
      %p59 = scmp.eq.s32.totalorder %s21, 0
      %p60 = por %p58, %p59
      %s61 = ssub.s32 %s22, %s34
      %p62 = scmp.eq.s32.totalorder %s61, 0
      %s64 = sadd.s32 %s63, 1
      %s65 = scalar_select %p62, %s63, %s64
      %p68 = pneg %p62
      %p69 = scmp.eq.s32.totalorder %s15, 1
      %p70 = por %p68, %p69
      %p71 = scmp.ne.s32.totalorder %s63, %s66
      %p72 = scmp.eq.s32.totalorder %s15, 0
      %p73 = por %p71, %p72
      %p74 = scmp.ne.s32.totalorder %s63, %s66
      %p75 = scmp.eq.s32.totalorder %s20, 1
      %p76 = por %p74, %p75
      %p77 = scmp.ne.s32.totalorder %s66, %s67
      %p78 = scmp.eq.s32.totalorder %s20, 0
      %p79 = por %p77, %p78
      %p80 = scmp.ne.s32.totalorder %s66, %s67
      %p81 = scmp.eq.s32.totalorder %s21, 1
      %p82 = por %p80, %p81
      %p84 = scmp.ne.s32.totalorder %s67, %s83
      %p85 = scmp.eq.s32.totalorder %s21, 0
      %p86 = por %p84, %p85
      %s87 = ssub.s32 %s23, %s30
      %s88 = ssub.s32 %s22, %s34
      %s89 = sor.u32 %s87, %s88
      %p90 = scmp.eq.s32.totalorder %s89, 0
      %s92 = sadd.s32 %s91, 1
      %s93 = scalar_select %p90, %s91, %s92
      %p96 = pneg %p90
      %p97 = scmp.eq.s32.totalorder %s15, 1
      %p98 = por %p96, %p97
      %p99 = scmp.ne.s32.totalorder %s91, %s94
      %p100 = scmp.eq.s32.totalorder %s15, 0
      %p101 = por %p99, %p100
      %p102 = scmp.ne.s32.totalorder %s91, %s94
      %p103 = scmp.eq.s32.totalorder %s20, 1
      %p104 = por %p102, %p103
      %p105 = scmp.ne.s32.totalorder %s94, %s95
      %p106 = scmp.eq.s32.totalorder %s20, 0
      %p107 = por %p105, %p106
      %p108 = scmp.ne.s32.totalorder %s94, %s95
      %p109 = scmp.eq.s32.totalorder %s21, 1
      %p110 = por %p108, %p109
      %p112 = scmp.ne.s32.totalorder %s95, %s111
      %p113 = scmp.eq.s32.totalorder %s21, 0
      %p114 = por %p112, %p113
      %p115 = scmp.le.s32.totalorder 1, %s15
      %p116 = scmp.lt.s32.totalorder %s15, 3
      %p117 = pnand %p115, %p116
      %p118 = pneg %p117
      // Predicated region
      $region9: #{tpu_custom_call.1} parent=5 // pred_check
        _
      $region10: #{tpu_custom_call.1} parent=5 // pred_check_branch
        %120 = sbr.rel (%p117) target = $region12
      $region11: #{tpu_custom_call.1} parent=5 // pred_region
        %s121 = ssub.s32 %s15, 1
        // Predicated region
        $region13: #{tpu_custom_call.1} parent=11 // pred_check
          %p122 = pneg %p79
        $region14: #{tpu_custom_call.1} parent=11 // pred_check_branch
          %124 = sbr.rel (%p122) target = $region16
        $region15: #{tpu_custom_call.1} parent=11 // pred_region
          %s126 = ssub.s32 512, 512
          %127 = vsyncadd [#allocation6], %s126
          %s128 = smul.addr %s24, 128
          %s129 = scalar_lea.hbm %s1, %s128
          %s130 = sshll.u32 [#allocation5], 4
          %s131 = int_to_ptr.vmem [resolvable:$true] %s130
          %136 = dma.hbm_to_vmem [thread:$0]  %s129, 512, %s131, [#allocation6], 128, 128, 8
        $region16: #{tpu_custom_call.1} parent=11 // pred_fallthru
          _
      $region12: #{tpu_custom_call.1} parent=5 // pred_fallthru
        _
      %p137 = scmp.lt.s32.totalorder %s15, 2
      // Predicated region
      $region17: #{tpu_custom_call.1} parent=5 // pred_check
        %p138 = pneg %p137
      $region18: #{tpu_custom_call.1} parent=5 // pred_check_branch
        %140 = sbr.rel (%p138) target = $region20
      $region19: #{tpu_custom_call.1} parent=5 // pred_region
        // Predicated region
        $region21: #{tpu_custom_call.1} parent=19 // pred_check
          %p141 = pneg %p47
        $region22: #{tpu_custom_call.1} parent=19 // pred_check_branch
          %143 = sbr.rel (%p141) target = $region24
        $region23: #{tpu_custom_call.1} parent=19 // pred_region
          %s144 = sand.u32 %s37, 1
          %s145 = scalar_lea.sflag [#allocation3], %s144
          %s146 = sand.u32 %s37, 1
          %s147 = smul.addr %s146, 8
          %s148 = scalar_lea.vmem [#allocation2], %s147
          %s150 = ssub.s32 128, 128
          %151 = vsyncadd %s145, %s150
          %s152 = smul.addr %s23, 128
          %s153 = scalar_lea.hbm %s0, %s152
          %s155 = sshll.u32 %s148, 4
          %s156 = int_to_ptr.vmem [resolvable:$true] %s155
          %158 = dma.hbm_to_vmem [thread:$0]  %s153, 128, %s156, %s145
        $region24: #{tpu_custom_call.1} parent=19 // pred_fallthru
          _
      $region20: #{tpu_custom_call.1} parent=5 // pred_fallthru
        _
      %p159 = scmp.le.s32.totalorder 1, %s15
      %p160 = scmp.lt.s32.totalorder %s15, 3
      %p161 = pnand %p159, %p160
      %p162 = pneg %p161
      // Predicated region
      $region25: #{tpu_custom_call.1} parent=5 // pred_check
        _
      $region26: #{tpu_custom_call.1} parent=5 // pred_check_branch
        %164 = sbr.rel (%p161) target = $region28
      $region27: #{tpu_custom_call.1} parent=5 // pred_region
        %s165 = ssub.s32 %s15, 1
        %s166 = sand.u32 %s40, 1
        %s167 = scalar_lea.sflag [#allocation3], %s166
        %s168 = sand.u32 %s40, 1
        %s169 = smul.addr %s168, 8
        %s170 = scalar_lea.vmem [#allocation2], %s169
        // Predicated region
        $region29: #{tpu_custom_call.1} parent=27 // pred_check
          %p171 = pneg %p53
        $region30: #{tpu_custom_call.1} parent=27 // pred_check_branch
          %173 = sbr.rel (%p171) target = $region32
        $region31: #{tpu_custom_call.1} parent=27 // pred_region
          %174 = dma.done %s167, 128
        $region32: #{tpu_custom_call.1} parent=27 // pred_fallthru
          _
        // Predicated region
        $region33: #{tpu_custom_call.1} parent=27 // pred_check
          %p175 = pneg %p79
        $region34: #{tpu_custom_call.1} parent=27 // pred_check_branch
          %177 = sbr.rel (%p175) target = $region36
        $region35: #{tpu_custom_call.1} parent=27 // pred_region
          %178 = dma.done [#allocation6], 512
        $region36: #{tpu_custom_call.1} parent=27 // pred_fallthru
          _
        %s179 = sand.u32 %s40, 1
        %s180 = scalar_lea.sflag [#allocation3], %s179
        %s181 = sand.u32 %s40, 1
        %s182 = smul.addr %s181, 8
        %s183 = scalar_lea.vmem [#allocation2], %s182
        %p184 = pneg %p53
        %p185 = pneg %p50
        %p186 = pneg %p79
        %p187 = pneg %p76
        %p188 = pneg %p107
        %p189 = pneg %p104
        %s190 = sand.u32 %s94, 1
        %s191 = scalar_lea.sflag [#allocation4], %s190
        %s192 = sand.u32 %s94, 1
        %s193 = smul.addr %s192, 8
        %s194 = scalar_lea.vmem [#allocation7], %s193
        %v196 = vld [vmem:[#allocation5] sm:$0xff]
        %v197 = vld [vmem:[#allocation5 + $0x8] sm:$0xff]
        %v198 = vld [vmem:[#allocation5 + $0x10] sm:$0xff]
        %v199 = vld [vmem:[#allocation5 + $0x18] sm:$0xff]
        %vm200 = vcmp.ne.f32.partialorder %v196, 0.0
        %vm201 = vcmp.ne.f32.partialorder %v197, 0.0
        %vm202 = vcmp.ne.f32.partialorder %v198, 0.0
        %vm203 = vcmp.ne.f32.partialorder %v199, 0.0
        %v204 = vsel %vm200, 1, 0
        %v205 = vsel %vm201, 1, 0
        %v206 = vsel %vm202, 1, 0
        %v207 = vsel %vm203, 1, 0
        %v208 = vcvt.s32.f32 %v204
        %v209 = vcvt.s32.f32 %v205
        %v210 = vcvt.s32.f32 %v206
        %v211 = vcvt.s32.f32 %v207
        %v212 = vpack.c.bf16 %v209, %v208
        %v213 = vpack.c.bf16 %v211, %v210
        %v214 = vld [vmem:[%s170] sm:$0xff]
        %vm215 = vcmp.ne.f32.partialorder %v214, 0.0
        %v216 = vsel %vm215, %v214, 1.0
        %v217 = vsel %vm215, 1, 0
        %v218 = vcvt.s32.f32 %v217
        %v219 = vpack.c.bf16 %v218, %v218
        %vm220 = vcmask 261120
        %v222 = vsel %vm220, %v219, 0
        %224 = vmatprep.subr.bf16.mxu0 0
        %225 = vmatpush1.bf16.msra.mxu0 0
        %226 = vmatprep.subr.bf16.mxu0 0
        %227 = vmatpush1.bf16.msra.mxu0 0
        %228 = vmatprep.subr.bf16.mxu0 0
        %229 = vmatpush1.bf16.msra.mxu0 0
        %230 = vmatprep.subr.bf16.mxu0 0
        %231 = vmatpush1.bf16.msra.mxu0 0
        %232 = vmatprep.subr.bf16.mxu0 0
        %233 = vmatpush1.bf16.msra.mxu0 0
        %234 = vmatprep.subr.bf16.mxu0 0
        %235 = vmatpush1.bf16.msra.mxu0 0
        %236 = vmatprep.subr.bf16.mxu0 0
        %237 = vmatpush1.bf16.msra.mxu0 %v213
        %238 = vmatprep.subr.bf16.mxu0 0
        %239 = vmatpush1.bf16.msra.mxu0 %v212
        %240 = vmatprep.subr.bf16.mxu0 0
        %241 = vmatpush2.bf16.msra.mxu0 0
        %242 = vmatprep.subr.bf16.mxu0 0
        %243 = vmatpush2.bf16.msra.mxu0 0
        %244 = vmatprep.subr.bf16.mxu0 0
        %245 = vmatpush2.bf16.msra.mxu0 0
        %246 = vmatprep.subr.bf16.mxu0 0
        %247 = vmatpush2.bf16.msra.mxu0 0
        %248 = vmatprep.subr.bf16.mxu0 0
        %249 = vmatpush2.bf16.msra.mxu0 0
        %250 = vmatprep.subr.bf16.mxu0 0
        %251 = vmatpush2.bf16.msra.mxu0 0
        %252 = vmatprep.subr.bf16.mxu0 0
        %253 = vmatpush2.bf16.msra.mxu0 0
        %254 = vmatprep.subr.bf16.mxu0 0
        %255 = vmatpush2.bf16.msra.mxu0 0
        %256 = vmatprep.mubr.bf16.mxu0 0
        %257 = vmatmul.mubr.bf16.gmra.mxu0 %v222
        %v258 = vpop.f32.mrf.mxu0
        %v259 = vadd.f32 0.0, %v258
        %v260 = vpop.f32.mrf.mxu0
        %v261 = vpop.f32.mrf.mxu0
        %v262 = vpop.f32.mrf.mxu0
        %263 = vdwg.mxu0
        %vm264 = vcmp.eq.s32.totalorder %v204, 1
        %266 = vset.pattern.permute.xlu0 0
        %267 = vperm.xlu0 %266, %v216
        %v268 = vpop.permute.xlu0 %267
        %v269 = vrot.slane %v268, 1
        %v270 = vrot.slane %v268, 2
        %v271 = vrot.slane %v268, 3
        %v272 = vrot.slane %v268, 4
        %v273 = vrot.slane %v268, 5
        %v274 = vrot.slane %v268, 6
        %v275 = vrot.slane %v268, 7
        %v284 = vsel %vm264, %v268, 1.0
        %v285 = vsel %vm264, %v269, 1.0
        %v286 = vsel %vm264, %v270, 1.0
        %v287 = vsel %vm264, %v271, 1.0
        %v288 = vsel %vm264, %v272, 1.0
        %v289 = vsel %vm264, %v273, 1.0
        %v290 = vsel %vm264, %v274, 1.0
        %v291 = vsel %vm264, %v275, 1.0
        %292 = vset.pattern.permute.xlu0 1
        %293 = vperm.xlu0 %292, %v216
        %v294 = vpop.permute.xlu0 %293
        %v295 = vrot.slane %v294, 7
        %v296 = vrot.slane %v294, 1
        %v297 = vrot.slane %v294, 2
        %v298 = vrot.slane %v294, 3
        %v299 = vrot.slane %v294, 4
        %v300 = vrot.slane %v294, 5
        %v301 = vrot.slane %v294, 6
        %v310 = vsel %vm264, %v295, 1.0
        %v311 = vsel %vm264, %v294, 1.0
        %v312 = vsel %vm264, %v296, 1.0
        %v313 = vsel %vm264, %v297, 1.0
        %v314 = vsel %vm264, %v298, 1.0
        %v315 = vsel %vm264, %v299, 1.0
        %v316 = vsel %vm264, %v300, 1.0
        %v317 = vsel %vm264, %v301, 1.0
        %v326 = vrot.slane %v310, 1
        %v327 = vrot.slane %v311, 1
        %v328 = vrot.slane %v312, 1
        %v329 = vrot.slane %v313, 1
        %v330 = vrot.slane %v314, 1
        %v331 = vrot.slane %v315, 1
        %v332 = vrot.slane %v316, 1
        %v333 = vrot.slane %v317, 1
        %v342 = vmul.f32 %v284, %v326
        %v343 = vmul.f32 %v285, %v327
        %v344 = vmul.f32 %v286, %v328
        %v345 = vmul.f32 %v287, %v329
        %v346 = vmul.f32 %v288, %v330
        %v347 = vmul.f32 %v289, %v331
        %v348 = vmul.f32 %v290, %v332
        %v349 = vmul.f32 %v291, %v333
        %350 = vset.pattern.permute.xlu0 2
        %351 = vperm.xlu0 %350, %v216
        %v352 = vpop.permute.xlu0 %351
        %v353 = vrot.slane %v352, 6
        %v354 = vrot.slane %v352, 7
        %v355 = vrot.slane %v352, 1
        %v356 = vrot.slane %v352, 2
        %v357 = vrot.slane %v352, 3
        %v358 = vrot.slane %v352, 4
        %v359 = vrot.slane %v352, 5
        %v368 = vsel %vm264, %v353, 1.0
        %v369 = vsel %vm264, %v354, 1.0
        %v370 = vsel %vm264, %v352, 1.0
        %v371 = vsel %vm264, %v355, 1.0
        %v372 = vsel %vm264, %v356, 1.0
        %v373 = vsel %vm264, %v357, 1.0
        %v374 = vsel %vm264, %v358, 1.0
        %v375 = vsel %vm264, %v359, 1.0
        %v384 = vrot.slane %v368, 2
        %v385 = vrot.slane %v369, 2
        %v386 = vrot.slane %v370, 2
        %v387 = vrot.slane %v371, 2
        %v388 = vrot.slane %v372, 2
        %v389 = vrot.slane %v373, 2
        %v390 = vrot.slane %v374, 2
        %v391 = vrot.slane %v375, 2
        %v400 = vmul.f32 %v342, %v384
        %v401 = vmul.f32 %v343, %v385
        %v402 = vmul.f32 %v344, %v386
        %v403 = vmul.f32 %v345, %v387
        %v404 = vmul.f32 %v346, %v388
        %v405 = vmul.f32 %v347, %v389
        %v406 = vmul.f32 %v348, %v390
        %v407 = vmul.f32 %v349, %v391
        %408 = vset.pattern.permute.xlu0 3
        %409 = vperm.xlu0 %408, %v216
        %v410 = vpop.permute.xlu0 %409
        %v411 = vrot.slane %v410, 5
        %v412 = vrot.slane %v410, 6
        %v413 = vrot.slane %v410, 7
        %v414 = vrot.slane %v410, 1
        %v415 = vrot.slane %v410, 2
        %v416 = vrot.slane %v410, 3
        %v417 = vrot.slane %v410, 4
        %v426 = vsel %vm264, %v411, 1.0
        %v427 = vsel %vm264, %v412, 1.0
        %v428 = vsel %vm264, %v413, 1.0
        %v429 = vsel %vm264, %v410, 1.0
        %v430 = vsel %vm264, %v414, 1.0
        %v431 = vsel %vm264, %v415, 1.0
        %v432 = vsel %vm264, %v416, 1.0
        %v433 = vsel %vm264, %v417, 1.0
        %v442 = vrot.slane %v426, 3
        %v443 = vrot.slane %v427, 3
        %v444 = vrot.slane %v428, 3
        %v445 = vrot.slane %v429, 3
        %v446 = vrot.slane %v430, 3
        %v447 = vrot.slane %v431, 3
        %v448 = vrot.slane %v432, 3
        %v449 = vrot.slane %v433, 3
        %v458 = vmul.f32 %v400, %v442
        %v459 = vmul.f32 %v401, %v443
        %v460 = vmul.f32 %v402, %v444
        %v461 = vmul.f32 %v403, %v445
        %v462 = vmul.f32 %v404, %v446
        %v463 = vmul.f32 %v405, %v447
        %v464 = vmul.f32 %v406, %v448
        %v465 = vmul.f32 %v407, %v449
        %466 = vset.pattern.permute.xlu0 4
        %467 = vperm.xlu0 %466, %v216
        %v468 = vpop.permute.xlu0 %467
        %v469 = vrot.slane %v468, 4
        %v470 = vrot.slane %v468, 5
        %v471 = vrot.slane %v468, 6
        %v472 = vrot.slane %v468, 7
        %v473 = vrot.slane %v468, 1
        %v474 = vrot.slane %v468, 2
        %v475 = vrot.slane %v468, 3
        %v484 = vsel %vm264, %v469, 1.0
        %v485 = vsel %vm264, %v470, 1.0
        %v486 = vsel %vm264, %v471, 1.0
        %v487 = vsel %vm264, %v472, 1.0
        %v488 = vsel %vm264, %v468, 1.0
        %v489 = vsel %vm264, %v473, 1.0
        %v490 = vsel %vm264, %v474, 1.0
        %v491 = vsel %vm264, %v475, 1.0
        %v500 = vrot.slane %v484, 4
        %v501 = vrot.slane %v485, 4
        %v502 = vrot.slane %v486, 4
        %v503 = vrot.slane %v487, 4
        %v504 = vrot.slane %v488, 4
        %v505 = vrot.slane %v489, 4
        %v506 = vrot.slane %v490, 4
        %v507 = vrot.slane %v491, 4
        %v516 = vmul.f32 %v458, %v500
        %v517 = vmul.f32 %v459, %v501
        %v518 = vmul.f32 %v460, %v502
        %v519 = vmul.f32 %v461, %v503
        %v520 = vmul.f32 %v462, %v504
        %v521 = vmul.f32 %v463, %v505
        %v522 = vmul.f32 %v464, %v506
        %v523 = vmul.f32 %v465, %v507
        %524 = vset.pattern.permute.xlu0 5
        %525 = vperm.xlu0 %524, %v216
        %v526 = vpop.permute.xlu0 %525
        %v527 = vrot.slane %v526, 3
        %v528 = vrot.slane %v526, 4
        %v529 = vrot.slane %v526, 5
        %v530 = vrot.slane %v526, 6
        %v531 = vrot.slane %v526, 7
        %v532 = vrot.slane %v526, 1
        %v533 = vrot.slane %v526, 2
        %v542 = vsel %vm264, %v527, 1.0
        %v543 = vsel %vm264, %v528, 1.0
        %v544 = vsel %vm264, %v529, 1.0
        %v545 = vsel %vm264, %v530, 1.0
        %v546 = vsel %vm264, %v531, 1.0
        %v547 = vsel %vm264, %v526, 1.0
        %v548 = vsel %vm264, %v532, 1.0
        %v549 = vsel %vm264, %v533, 1.0
        %v558 = vrot.slane %v542, 5
        %v559 = vrot.slane %v543, 5
        %v560 = vrot.slane %v544, 5
        %v561 = vrot.slane %v545, 5
        %v562 = vrot.slane %v546, 5
        %v563 = vrot.slane %v547, 5
        %v564 = vrot.slane %v548, 5
        %v565 = vrot.slane %v549, 5
        %v574 = vmul.f32 %v516, %v558
        %v575 = vmul.f32 %v517, %v559
        %v576 = vmul.f32 %v518, %v560
        %v577 = vmul.f32 %v519, %v561
        %v578 = vmul.f32 %v520, %v562
        %v579 = vmul.f32 %v521, %v563
        %v580 = vmul.f32 %v522, %v564
        %v581 = vmul.f32 %v523, %v565
        %582 = vset.pattern.permute.xlu0 6
        %583 = vperm.xlu0 %582, %v216
        %v584 = vpop.permute.xlu0 %583
        %v585 = vrot.slane %v584, 2
        %v586 = vrot.slane %v584, 3
        %v587 = vrot.slane %v584, 4
        %v588 = vrot.slane %v584, 5
        %v589 = vrot.slane %v584, 6
        %v590 = vrot.slane %v584, 7
        %v591 = vrot.slane %v584, 1
        %v600 = vsel %vm264, %v585, 1.0
        %v601 = vsel %vm264, %v586, 1.0
        %v602 = vsel %vm264, %v587, 1.0
        %v603 = vsel %vm264, %v588, 1.0
        %v604 = vsel %vm264, %v589, 1.0
        %v605 = vsel %vm264, %v590, 1.0
        %v606 = vsel %vm264, %v584, 1.0
        %v607 = vsel %vm264, %v591, 1.0
        %v616 = vrot.slane %v600, 6
        %v617 = vrot.slane %v601, 6
        %v618 = vrot.slane %v602, 6
        %v619 = vrot.slane %v603, 6
        %v620 = vrot.slane %v604, 6
        %v621 = vrot.slane %v605, 6
        %v622 = vrot.slane %v606, 6
        %v623 = vrot.slane %v607, 6
        %v632 = vmul.f32 %v574, %v616
        %v633 = vmul.f32 %v575, %v617
        %v634 = vmul.f32 %v576, %v618
        %v635 = vmul.f32 %v577, %v619
        %v636 = vmul.f32 %v578, %v620
        %v637 = vmul.f32 %v579, %v621
        %v638 = vmul.f32 %v580, %v622
        %v639 = vmul.f32 %v581, %v623
        %640 = vset.pattern.permute.xlu0 7
        %641 = vperm.xlu0 %640, %v216
        %v642 = vpop.permute.xlu0 %641
        %v643 = vrot.slane %v642, 1
        %v644 = vrot.slane %v642, 2
        %v645 = vrot.slane %v642, 3
        %v646 = vrot.slane %v642, 4
        %v647 = vrot.slane %v642, 5
        %v648 = vrot.slane %v642, 6
        %v649 = vrot.slane %v642, 7
        %v658 = vsel %vm264, %v643, 1.0
        %v659 = vsel %vm264, %v644, 1.0
        %v660 = vsel %vm264, %v645, 1.0
        %v661 = vsel %vm264, %v646, 1.0
        %v662 = vsel %vm264, %v647, 1.0
        %v663 = vsel %vm264, %v648, 1.0
        %v664 = vsel %vm264, %v649, 1.0
        %v665 = vsel %vm264, %v642, 1.0
        %v674 = vrot.slane %v658, 7
        %v675 = vrot.slane %v659, 7
        %v676 = vrot.slane %v660, 7
        %v677 = vrot.slane %v661, 7
        %v678 = vrot.slane %v662, 7
        %v679 = vrot.slane %v663, 7
        %v680 = vrot.slane %v664, 7
        %v681 = vrot.slane %v665, 7
        %v690 = vmul.f32 %v632, %v674
        %v691 = vmul.f32 %v633, %v675
        %v692 = vmul.f32 %v634, %v676
        %v693 = vmul.f32 %v635, %v677
        %v694 = vmul.f32 %v636, %v678
        %v695 = vmul.f32 %v637, %v679
        %v696 = vmul.f32 %v638, %v680
        %v697 = vmul.f32 %v639, %v681
        %vm698 = vcmp.eq.s32.totalorder %v205, 1
        %699 = vset.pattern.permute.xlu0 8
        %700 = vperm.xlu0 %699, %v216
        %v701 = vpop.permute.xlu0 %700
        %v702 = vrot.slane %v701, 1
        %v703 = vrot.slane %v701, 2
        %v704 = vrot.slane %v701, 3
        %v705 = vrot.slane %v701, 4
        %v706 = vrot.slane %v701, 5
        %v707 = vrot.slane %v701, 6
        %v708 = vrot.slane %v701, 7
        %v717 = vsel %vm698, %v701, 1.0
        %v718 = vsel %vm698, %v702, 1.0
        %v719 = vsel %vm698, %v703, 1.0
        %v720 = vsel %vm698, %v704, 1.0
        %v721 = vsel %vm698, %v705, 1.0
        %v722 = vsel %vm698, %v706, 1.0
        %v723 = vsel %vm698, %v707, 1.0
        %v724 = vsel %vm698, %v708, 1.0
        %v725 = vmul.f32 %v690, %v717
        %v726 = vmul.f32 %v691, %v718
        %v727 = vmul.f32 %v692, %v719
        %v728 = vmul.f32 %v693, %v720
        %v729 = vmul.f32 %v694, %v721
        %v730 = vmul.f32 %v695, %v722
        %v731 = vmul.f32 %v696, %v723
        %v732 = vmul.f32 %v697, %v724
        %733 = vset.pattern.permute.xlu0 9
        %734 = vperm.xlu0 %733, %v216
        %v735 = vpop.permute.xlu0 %734
        %v736 = vrot.slane %v735, 7
        %v737 = vrot.slane %v735, 1
        %v738 = vrot.slane %v735, 2
        %v739 = vrot.slane %v735, 3
        %v740 = vrot.slane %v735, 4
        %v741 = vrot.slane %v735, 5
        %v742 = vrot.slane %v735, 6
        %v751 = vsel %vm698, %v736, 1.0
        %v752 = vsel %vm698, %v735, 1.0
        %v753 = vsel %vm698, %v737, 1.0
        %v754 = vsel %vm698, %v738, 1.0
        %v755 = vsel %vm698, %v739, 1.0
        %v756 = vsel %vm698, %v740, 1.0
        %v757 = vsel %vm698, %v741, 1.0
        %v758 = vsel %vm698, %v742, 1.0
        %v767 = vrot.slane %v751, 1
        %v768 = vrot.slane %v752, 1
        %v769 = vrot.slane %v753, 1
        %v770 = vrot.slane %v754, 1
        %v771 = vrot.slane %v755, 1
        %v772 = vrot.slane %v756, 1
        %v773 = vrot.slane %v757, 1
        %v774 = vrot.slane %v758, 1
        %v783 = vmul.f32 %v725, %v767
        %v784 = vmul.f32 %v726, %v768
        %v785 = vmul.f32 %v727, %v769
        %v786 = vmul.f32 %v728, %v770
        %v787 = vmul.f32 %v729, %v771
        %v788 = vmul.f32 %v730, %v772
        %v789 = vmul.f32 %v731, %v773
        %v790 = vmul.f32 %v732, %v774
        %791 = vset.pattern.permute.xlu0 10
        %792 = vperm.xlu0 %791, %v216
        %v793 = vpop.permute.xlu0 %792
        %v794 = vrot.slane %v793, 6
        %v795 = vrot.slane %v793, 7
        %v796 = vrot.slane %v793, 1
        %v797 = vrot.slane %v793, 2
        %v798 = vrot.slane %v793, 3
        %v799 = vrot.slane %v793, 4
        %v800 = vrot.slane %v793, 5
        %v809 = vsel %vm698, %v794, 1.0
        %v810 = vsel %vm698, %v795, 1.0
        %v811 = vsel %vm698, %v793, 1.0
        %v812 = vsel %vm698, %v796, 1.0
        %v813 = vsel %vm698, %v797, 1.0
        %v814 = vsel %vm698, %v798, 1.0
        %v815 = vsel %vm698, %v799, 1.0
        %v816 = vsel %vm698, %v800, 1.0
        %v825 = vrot.slane %v809, 2
        %v826 = vrot.slane %v810, 2
        %v827 = vrot.slane %v811, 2
        %v828 = vrot.slane %v812, 2
        %v829 = vrot.slane %v813, 2
        %v830 = vrot.slane %v814, 2
        %v831 = vrot.slane %v815, 2
        %v832 = vrot.slane %v816, 2
        %v841 = vmul.f32 %v783, %v825
        %v842 = vmul.f32 %v784, %v826
        %v843 = vmul.f32 %v785, %v827
        %v844 = vmul.f32 %v786, %v828
        %v845 = vmul.f32 %v787, %v829
        %v846 = vmul.f32 %v788, %v830
        %v847 = vmul.f32 %v789, %v831
        %v848 = vmul.f32 %v790, %v832
        %849 = vset.pattern.permute.xlu0 11
        %850 = vperm.xlu0 %849, %v216
        %v851 = vpop.permute.xlu0 %850
        %v852 = vrot.slane %v851, 5
        %v853 = vrot.slane %v851, 6
        %v854 = vrot.slane %v851, 7
        %v855 = vrot.slane %v851, 1
        %v856 = vrot.slane %v851, 2
        %v857 = vrot.slane %v851, 3
        %v858 = vrot.slane %v851, 4
        %v867 = vsel %vm698, %v852, 1.0
        %v868 = vsel %vm698, %v853, 1.0
        %v869 = vsel %vm698, %v854, 1.0
        %v870 = vsel %vm698, %v851, 1.0
        %v871 = vsel %vm698, %v855, 1.0
        %v872 = vsel %vm698, %v856, 1.0
        %v873 = vsel %vm698, %v857, 1.0
        %v874 = vsel %vm698, %v858, 1.0
        %v883 = vrot.slane %v867, 3
        %v884 = vrot.slane %v868, 3
        %v885 = vrot.slane %v869, 3
        %v886 = vrot.slane %v870, 3
        %v887 = vrot.slane %v871, 3
        %v888 = vrot.slane %v872, 3
        %v889 = vrot.slane %v873, 3
        %v890 = vrot.slane %v874, 3
        %v899 = vmul.f32 %v841, %v883
        %v900 = vmul.f32 %v842, %v884
        %v901 = vmul.f32 %v843, %v885
        %v902 = vmul.f32 %v844, %v886
        %v903 = vmul.f32 %v845, %v887
        %v904 = vmul.f32 %v846, %v888
        %v905 = vmul.f32 %v847, %v889
        %v906 = vmul.f32 %v848, %v890
        %907 = vset.pattern.permute.xlu0 12
        %908 = vperm.xlu0 %907, %v216
        %v909 = vpop.permute.xlu0 %908
        %v910 = vrot.slane %v909, 4
        %v911 = vrot.slane %v909, 5
        %v912 = vrot.slane %v909, 6
        %v913 = vrot.slane %v909, 7
        %v914 = vrot.slane %v909, 1
        %v915 = vrot.slane %v909, 2
        %v916 = vrot.slane %v909, 3
        %v925 = vsel %vm698, %v910, 1.0
        %v926 = vsel %vm698, %v911, 1.0
        %v927 = vsel %vm698, %v912, 1.0
        %v928 = vsel %vm698, %v913, 1.0
        %v929 = vsel %vm698, %v909, 1.0
        %v930 = vsel %vm698, %v914, 1.0
        %v931 = vsel %vm698, %v915, 1.0
        %v932 = vsel %vm698, %v916, 1.0
        %v941 = vrot.slane %v925, 4
        %v942 = vrot.slane %v926, 4
        %v943 = vrot.slane %v927, 4
        %v944 = vrot.slane %v928, 4
        %v945 = vrot.slane %v929, 4
        %v946 = vrot.slane %v930, 4
        %v947 = vrot.slane %v931, 4
        %v948 = vrot.slane %v932, 4
        %v957 = vmul.f32 %v899, %v941
        %v958 = vmul.f32 %v900, %v942
        %v959 = vmul.f32 %v901, %v943
        %v960 = vmul.f32 %v902, %v944
        %v961 = vmul.f32 %v903, %v945
        %v962 = vmul.f32 %v904, %v946
        %v963 = vmul.f32 %v905, %v947
        %v964 = vmul.f32 %v906, %v948
        %965 = vset.pattern.permute.xlu0 13
        %966 = vperm.xlu0 %965, %v216
        %v967 = vpop.permute.xlu0 %966
        %v968 = vrot.slane %v967, 3
        %v969 = vrot.slane %v967, 4
        %v970 = vrot.slane %v967, 5
        %v971 = vrot.slane %v967, 6
        %v972 = vrot.slane %v967, 7
        %v973 = vrot.slane %v967, 1
        %v974 = vrot.slane %v967, 2
        %v983 = vsel %vm698, %v968, 1.0
        %v984 = vsel %vm698, %v969, 1.0
        %v985 = vsel %vm698, %v970, 1.0
        %v986 = vsel %vm698, %v971, 1.0
        %v987 = vsel %vm698, %v972, 1.0
        %v988 = vsel %vm698, %v967, 1.0
        %v989 = vsel %vm698, %v973, 1.0
        %v990 = vsel %vm698, %v974, 1.0
        %v999 = vrot.slane %v983, 5
        %v1000 = vrot.slane %v984, 5
        %v1001 = vrot.slane %v985, 5
        %v1002 = vrot.slane %v986, 5
        %v1003 = vrot.slane %v987, 5
        %v1004 = vrot.slane %v988, 5
        %v1005 = vrot.slane %v989, 5
        %v1006 = vrot.slane %v990, 5
        %v1015 = vmul.f32 %v957, %v999
        %v1016 = vmul.f32 %v958, %v1000
        %v1017 = vmul.f32 %v959, %v1001
        %v1018 = vmul.f32 %v960, %v1002
        %v1019 = vmul.f32 %v961, %v1003
        %v1020 = vmul.f32 %v962, %v1004
        %v1021 = vmul.f32 %v963, %v1005
        %v1022 = vmul.f32 %v964, %v1006
        %1023 = vset.pattern.permute.xlu0 14
        %1024 = vperm.xlu0 %1023, %v216
        %v1025 = vpop.permute.xlu0 %1024
        %v1026 = vrot.slane %v1025, 2
        %v1027 = vrot.slane %v1025, 3
        %v1028 = vrot.slane %v1025, 4
        %v1029 = vrot.slane %v1025, 5
        %v1030 = vrot.slane %v1025, 6
        %v1031 = vrot.slane %v1025, 7
        %v1032 = vrot.slane %v1025, 1
        %v1041 = vsel %vm698, %v1026, 1.0
        %v1042 = vsel %vm698, %v1027, 1.0
        %v1043 = vsel %vm698, %v1028, 1.0
        %v1044 = vsel %vm698, %v1029, 1.0
        %v1045 = vsel %vm698, %v1030, 1.0
        %v1046 = vsel %vm698, %v1031, 1.0
        %v1047 = vsel %vm698, %v1025, 1.0
        %v1048 = vsel %vm698, %v1032, 1.0
        %v1057 = vrot.slane %v1041, 6
        %v1058 = vrot.slane %v1042, 6
        %v1059 = vrot.slane %v1043, 6
        %v1060 = vrot.slane %v1044, 6
        %v1061 = vrot.slane %v1045, 6
        %v1062 = vrot.slane %v1046, 6
        %v1063 = vrot.slane %v1047, 6
        %v1064 = vrot.slane %v1048, 6
        %v1073 = vmul.f32 %v1015, %v1057
        %v1074 = vmul.f32 %v1016, %v1058
        %v1075 = vmul.f32 %v1017, %v1059
        %v1076 = vmul.f32 %v1018, %v1060
        %v1077 = vmul.f32 %v1019, %v1061
        %v1078 = vmul.f32 %v1020, %v1062
        %v1079 = vmul.f32 %v1021, %v1063
        %v1080 = vmul.f32 %v1022, %v1064
        %1081 = vset.pattern.permute.xlu0 15
        %1082 = vperm.xlu0 %1081, %v216
        %v1083 = vpop.permute.xlu0 %1082
        %v1084 = vrot.slane %v1083, 1
        %v1085 = vrot.slane %v1083, 2
        %v1086 = vrot.slane %v1083, 3
        %v1087 = vrot.slane %v1083, 4
        %v1088 = vrot.slane %v1083, 5
        %v1089 = vrot.slane %v1083, 6
        %v1090 = vrot.slane %v1083, 7
        %v1099 = vsel %vm698, %v1084, 1.0
        %v1100 = vsel %vm698, %v1085, 1.0
        %v1101 = vsel %vm698, %v1086, 1.0
        %v1102 = vsel %vm698, %v1087, 1.0
        %v1103 = vsel %vm698, %v1088, 1.0
        %v1104 = vsel %vm698, %v1089, 1.0
        %v1105 = vsel %vm698, %v1090, 1.0
        %v1106 = vsel %vm698, %v1083, 1.0
        %v1115 = vrot.slane %v1099, 7
        %v1116 = vrot.slane %v1100, 7
        %v1117 = vrot.slane %v1101, 7
        %v1118 = vrot.slane %v1102, 7
        %v1119 = vrot.slane %v1103, 7
        %v1120 = vrot.slane %v1104, 7
        %v1121 = vrot.slane %v1105, 7
        %v1122 = vrot.slane %v1106, 7
        %v1131 = vmul.f32 %v1073, %v1115
        %v1132 = vmul.f32 %v1074, %v1116
        %v1133 = vmul.f32 %v1075, %v1117
        %v1134 = vmul.f32 %v1076, %v1118
        %v1135 = vmul.f32 %v1077, %v1119
        %v1136 = vmul.f32 %v1078, %v1120
        %v1137 = vmul.f32 %v1079, %v1121
        %v1138 = vmul.f32 %v1080, %v1122
        %vm1139 = vcmp.eq.s32.totalorder %v206, 1
        %1140 = vset.pattern.permute.xlu0 16
        %1141 = vperm.xlu0 %1140, %v216
        %v1142 = vpop.permute.xlu0 %1141
        %v1143 = vrot.slane %v1142, 1
        %v1144 = vrot.slane %v1142, 2
        %v1145 = vrot.slane %v1142, 3
        %v1146 = vrot.slane %v1142, 4
        %v1147 = vrot.slane %v1142, 5
        %v1148 = vrot.slane %v1142, 6
        %v1149 = vrot.slane %v1142, 7
        %v1158 = vsel %vm1139, %v1142, 1.0
        %v1159 = vsel %vm1139, %v1143, 1.0
        %v1160 = vsel %vm1139, %v1144, 1.0
        %v1161 = vsel %vm1139, %v1145, 1.0
        %v1162 = vsel %vm1139, %v1146, 1.0
        %v1163 = vsel %vm1139, %v1147, 1.0
        %v1164 = vsel %vm1139, %v1148, 1.0
        %v1165 = vsel %vm1139, %v1149, 1.0
        %v1166 = vmul.f32 %v1131, %v1158
        %v1167 = vmul.f32 %v1132, %v1159
        %v1168 = vmul.f32 %v1133, %v1160
        %v1169 = vmul.f32 %v1134, %v1161
        %v1170 = vmul.f32 %v1135, %v1162
        %v1171 = vmul.f32 %v1136, %v1163
        %v1172 = vmul.f32 %v1137, %v1164
        %v1173 = vmul.f32 %v1138, %v1165
        %1174 = vset.pattern.permute.xlu0 17
        %1175 = vperm.xlu0 %1174, %v216
        %v1176 = vpop.permute.xlu0 %1175
        %v1177 = vrot.slane %v1176, 7
        %v1178 = vrot.slane %v1176, 1
        %v1179 = vrot.slane %v1176, 2
        %v1180 = vrot.slane %v1176, 3
        %v1181 = vrot.slane %v1176, 4
        %v1182 = vrot.slane %v1176, 5
        %v1183 = vrot.slane %v1176, 6
        %v1192 = vsel %vm1139, %v1177, 1.0
        %v1193 = vsel %vm1139, %v1176, 1.0
        %v1194 = vsel %vm1139, %v1178, 1.0
        %v1195 = vsel %vm1139, %v1179, 1.0
        %v1196 = vsel %vm1139, %v1180, 1.0
        %v1197 = vsel %vm1139, %v1181, 1.0
        %v1198 = vsel %vm1139, %v1182, 1.0
        %v1199 = vsel %vm1139, %v1183, 1.0
        %v1208 = vrot.slane %v1192, 1
        %v1209 = vrot.slane %v1193, 1
        %v1210 = vrot.slane %v1194, 1
        %v1211 = vrot.slane %v1195, 1
        %v1212 = vrot.slane %v1196, 1
        %v1213 = vrot.slane %v1197, 1
        %v1214 = vrot.slane %v1198, 1
        %v1215 = vrot.slane %v1199, 1
        %v1224 = vmul.f32 %v1166, %v1208
        %v1225 = vmul.f32 %v1167, %v1209
        %v1226 = vmul.f32 %v1168, %v1210
        %v1227 = vmul.f32 %v1169, %v1211
        %v1228 = vmul.f32 %v1170, %v1212
        %v1229 = vmul.f32 %v1171, %v1213
        %v1230 = vmul.f32 %v1172, %v1214
        %v1231 = vmul.f32 %v1173, %v1215
        %1232 = vset.pattern.permute.xlu0 18
        %1233 = vperm.xlu0 %1232, %v216
        %v1234 = vpop.permute.xlu0 %1233
        %v1235 = vrot.slane %v1234, 6
        %v1236 = vrot.slane %v1234, 7
        %v1237 = vrot.slane %v1234, 1
        %v1238 = vrot.slane %v1234, 2
        %v1239 = vrot.slane %v1234, 3
        %v1240 = vrot.slane %v1234, 4
        %v1241 = vrot.slane %v1234, 5
        %v1250 = vsel %vm1139, %v1235, 1.0
        %v1251 = vsel %vm1139, %v1236, 1.0
        %v1252 = vsel %vm1139, %v1234, 1.0
        %v1253 = vsel %vm1139, %v1237, 1.0
        %v1254 = vsel %vm1139, %v1238, 1.0
        %v1255 = vsel %vm1139, %v1239, 1.0
        %v1256 = vsel %vm1139, %v1240, 1.0
        %v1257 = vsel %vm1139, %v1241, 1.0
        %v1266 = vrot.slane %v1250, 2
        %v1267 = vrot.slane %v1251, 2
        %v1268 = vrot.slane %v1252, 2
        %v1269 = vrot.slane %v1253, 2
        %v1270 = vrot.slane %v1254, 2
        %v1271 = vrot.slane %v1255, 2
        %v1272 = vrot.slane %v1256, 2
        %v1273 = vrot.slane %v1257, 2
        %v1282 = vmul.f32 %v1224, %v1266
        %v1283 = vmul.f32 %v1225, %v1267
        %v1284 = vmul.f32 %v1226, %v1268
        %v1285 = vmul.f32 %v1227, %v1269
        %v1286 = vmul.f32 %v1228, %v1270
        %v1287 = vmul.f32 %v1229, %v1271
        %v1288 = vmul.f32 %v1230, %v1272
        %v1289 = vmul.f32 %v1231, %v1273
        %1290 = vset.pattern.permute.xlu0 19
        %1291 = vperm.xlu0 %1290, %v216
        %v1292 = vpop.permute.xlu0 %1291
        %v1293 = vrot.slane %v1292, 5
        %v1294 = vrot.slane %v1292, 6
        %v1295 = vrot.slane %v1292, 7
        %v1296 = vrot.slane %v1292, 1
        %v1297 = vrot.slane %v1292, 2
        %v1298 = vrot.slane %v1292, 3
        %v1299 = vrot.slane %v1292, 4
        %v1308 = vsel %vm1139, %v1293, 1.0
        %v1309 = vsel %vm1139, %v1294, 1.0
        %v1310 = vsel %vm1139, %v1295, 1.0
        %v1311 = vsel %vm1139, %v1292, 1.0
        %v1312 = vsel %vm1139, %v1296, 1.0
        %v1313 = vsel %vm1139, %v1297, 1.0
        %v1314 = vsel %vm1139, %v1298, 1.0
        %v1315 = vsel %vm1139, %v1299, 1.0
        %v1324 = vrot.slane %v1308, 3
        %v1325 = vrot.slane %v1309, 3
        %v1326 = vrot.slane %v1310, 3
        %v1327 = vrot.slane %v1311, 3
        %v1328 = vrot.slane %v1312, 3
        %v1329 = vrot.slane %v1313, 3
        %v1330 = vrot.slane %v1314, 3
        %v1331 = vrot.slane %v1315, 3
        %v1340 = vmul.f32 %v1282, %v1324
        %v1341 = vmul.f32 %v1283, %v1325
        %v1342 = vmul.f32 %v1284, %v1326
        %v1343 = vmul.f32 %v1285, %v1327
        %v1344 = vmul.f32 %v1286, %v1328
        %v1345 = vmul.f32 %v1287, %v1329
        %v1346 = vmul.f32 %v1288, %v1330
        %v1347 = vmul.f32 %v1289, %v1331
        %1348 = vset.pattern.permute.xlu0 20
        %1349 = vperm.xlu0 %1348, %v216
        %v1350 = vpop.permute.xlu0 %1349
        %v1351 = vrot.slane %v1350, 4
        %v1352 = vrot.slane %v1350, 5
        %v1353 = vrot.slane %v1350, 6
        %v1354 = vrot.slane %v1350, 7
        %v1355 = vrot.slane %v1350, 1
        %v1356 = vrot.slane %v1350, 2
        %v1357 = vrot.slane %v1350, 3
        %v1366 = vsel %vm1139, %v1351, 1.0
        %v1367 = vsel %vm1139, %v1352, 1.0
        %v1368 = vsel %vm1139, %v1353, 1.0
        %v1369 = vsel %vm1139, %v1354, 1.0
        %v1370 = vsel %vm1139, %v1350, 1.0
        %v1371 = vsel %vm1139, %v1355, 1.0
        %v1372 = vsel %vm1139, %v1356, 1.0
        %v1373 = vsel %vm1139, %v1357, 1.0
        %v1382 = vrot.slane %v1366, 4
        %v1383 = vrot.slane %v1367, 4
        %v1384 = vrot.slane %v1368, 4
        %v1385 = vrot.slane %v1369, 4
        %v1386 = vrot.slane %v1370, 4
        %v1387 = vrot.slane %v1371, 4
        %v1388 = vrot.slane %v1372, 4
        %v1389 = vrot.slane %v1373, 4
        %v1398 = vmul.f32 %v1340, %v1382
        %v1399 = vmul.f32 %v1341, %v1383
        %v1400 = vmul.f32 %v1342, %v1384
        %v1401 = vmul.f32 %v1343, %v1385
        %v1402 = vmul.f32 %v1344, %v1386
        %v1403 = vmul.f32 %v1345, %v1387
        %v1404 = vmul.f32 %v1346, %v1388
        %v1405 = vmul.f32 %v1347, %v1389
        %1406 = vset.pattern.permute.xlu0 21
        %1407 = vperm.xlu0 %1406, %v216
        %v1408 = vpop.permute.xlu0 %1407
        %v1409 = vrot.slane %v1408, 3
        %v1410 = vrot.slane %v1408, 4
        %v1411 = vrot.slane %v1408, 5
        %v1412 = vrot.slane %v1408, 6
        %v1413 = vrot.slane %v1408, 7
        %v1414 = vrot.slane %v1408, 1
        %v1415 = vrot.slane %v1408, 2
        %v1424 = vsel %vm1139, %v1409, 1.0
        %v1425 = vsel %vm1139, %v1410, 1.0
        %v1426 = vsel %vm1139, %v1411, 1.0
        %v1427 = vsel %vm1139, %v1412, 1.0
        %v1428 = vsel %vm1139, %v1413, 1.0
        %v1429 = vsel %vm1139, %v1408, 1.0
        %v1430 = vsel %vm1139, %v1414, 1.0
        %v1431 = vsel %vm1139, %v1415, 1.0
        %v1440 = vrot.slane %v1424, 5
        %v1441 = vrot.slane %v1425, 5
        %v1442 = vrot.slane %v1426, 5
        %v1443 = vrot.slane %v1427, 5
        %v1444 = vrot.slane %v1428, 5
        %v1445 = vrot.slane %v1429, 5
        %v1446 = vrot.slane %v1430, 5
        %v1447 = vrot.slane %v1431, 5
        %v1456 = vmul.f32 %v1398, %v1440
        %v1457 = vmul.f32 %v1399, %v1441
        %v1458 = vmul.f32 %v1400, %v1442
        %v1459 = vmul.f32 %v1401, %v1443
        %v1460 = vmul.f32 %v1402, %v1444
        %v1461 = vmul.f32 %v1403, %v1445
        %v1462 = vmul.f32 %v1404, %v1446
        %v1463 = vmul.f32 %v1405, %v1447
        %1464 = vset.pattern.permute.xlu0 22
        %1465 = vperm.xlu0 %1464, %v216
        %v1466 = vpop.permute.xlu0 %1465
        %v1467 = vrot.slane %v1466, 2
        %v1468 = vrot.slane %v1466, 3
        %v1469 = vrot.slane %v1466, 4
        %v1470 = vrot.slane %v1466, 5
        %v1471 = vrot.slane %v1466, 6
        %v1472 = vrot.slane %v1466, 7
        %v1473 = vrot.slane %v1466, 1
        %v1482 = vsel %vm1139, %v1467, 1.0
        %v1483 = vsel %vm1139, %v1468, 1.0
        %v1484 = vsel %vm1139, %v1469, 1.0
        %v1485 = vsel %vm1139, %v1470, 1.0
        %v1486 = vsel %vm1139, %v1471, 1.0
        %v1487 = vsel %vm1139, %v1472, 1.0
        %v1488 = vsel %vm1139, %v1466, 1.0
        %v1489 = vsel %vm1139, %v1473, 1.0
        %v1498 = vrot.slane %v1482, 6
        %v1499 = vrot.slane %v1483, 6
        %v1500 = vrot.slane %v1484, 6
        %v1501 = vrot.slane %v1485, 6
        %v1502 = vrot.slane %v1486, 6
        %v1503 = vrot.slane %v1487, 6
        %v1504 = vrot.slane %v1488, 6
        %v1505 = vrot.slane %v1489, 6
        %v1514 = vmul.f32 %v1456, %v1498
        %v1515 = vmul.f32 %v1457, %v1499
        %v1516 = vmul.f32 %v1458, %v1500
        %v1517 = vmul.f32 %v1459, %v1501
        %v1518 = vmul.f32 %v1460, %v1502
        %v1519 = vmul.f32 %v1461, %v1503
        %v1520 = vmul.f32 %v1462, %v1504
        %v1521 = vmul.f32 %v1463, %v1505
        %1522 = vset.pattern.permute.xlu0 23
        %1523 = vperm.xlu0 %1522, %v216
        %v1524 = vpop.permute.xlu0 %1523
        %v1525 = vrot.slane %v1524, 1
        %v1526 = vrot.slane %v1524, 2
        %v1527 = vrot.slane %v1524, 3
        %v1528 = vrot.slane %v1524, 4
        %v1529 = vrot.slane %v1524, 5
        %v1530 = vrot.slane %v1524, 6
        %v1531 = vrot.slane %v1524, 7
        %v1540 = vsel %vm1139, %v1525, 1.0
        %v1541 = vsel %vm1139, %v1526, 1.0
        %v1542 = vsel %vm1139, %v1527, 1.0
        %v1543 = vsel %vm1139, %v1528, 1.0
        %v1544 = vsel %vm1139, %v1529, 1.0
        %v1545 = vsel %vm1139, %v1530, 1.0
        %v1546 = vsel %vm1139, %v1531, 1.0
        %v1547 = vsel %vm1139, %v1524, 1.0
        %v1556 = vrot.slane %v1540, 7
        %v1557 = vrot.slane %v1541, 7
        %v1558 = vrot.slane %v1542, 7
        %v1559 = vrot.slane %v1543, 7
        %v1560 = vrot.slane %v1544, 7
        %v1561 = vrot.slane %v1545, 7
        %v1562 = vrot.slane %v1546, 7
        %v1563 = vrot.slane %v1547, 7
        %v1572 = vmul.f32 %v1514, %v1556
        %v1573 = vmul.f32 %v1515, %v1557
        %v1574 = vmul.f32 %v1516, %v1558
        %v1575 = vmul.f32 %v1517, %v1559
        %v1576 = vmul.f32 %v1518, %v1560
        %v1577 = vmul.f32 %v1519, %v1561
        %v1578 = vmul.f32 %v1520, %v1562
        %v1579 = vmul.f32 %v1521, %v1563
        %vm1580 = vcmp.eq.s32.totalorder %v207, 1
        %1581 = vset.pattern.permute.xlu0 24
        %1582 = vperm.xlu0 %1581, %v216
        %v1583 = vpop.permute.xlu0 %1582
        %v1584 = vrot.slane %v1583, 1
        %v1585 = vrot.slane %v1583, 2
        %v1586 = vrot.slane %v1583, 3
        %v1587 = vrot.slane %v1583, 4
        %v1588 = vrot.slane %v1583, 5
        %v1589 = vrot.slane %v1583, 6
        %v1590 = vrot.slane %v1583, 7
        %v1599 = vsel %vm1580, %v1583, 1.0
        %v1600 = vsel %vm1580, %v1584, 1.0
        %v1601 = vsel %vm1580, %v1585, 1.0
        %v1602 = vsel %vm1580, %v1586, 1.0
        %v1603 = vsel %vm1580, %v1587, 1.0
        %v1604 = vsel %vm1580, %v1588, 1.0
        %v1605 = vsel %vm1580, %v1589, 1.0
        %v1606 = vsel %vm1580, %v1590, 1.0
        %v1607 = vmul.f32 %v1572, %v1599
        %v1608 = vmul.f32 %v1573, %v1600
        %v1609 = vmul.f32 %v1574, %v1601
        %v1610 = vmul.f32 %v1575, %v1602
        %v1611 = vmul.f32 %v1576, %v1603
        %v1612 = vmul.f32 %v1577, %v1604
        %v1613 = vmul.f32 %v1578, %v1605
        %v1614 = vmul.f32 %v1579, %v1606
        %1615 = vset.pattern.permute.xlu0 25
        %1616 = vperm.xlu0 %1615, %v216
        %v1617 = vpop.permute.xlu0 %1616
        %v1618 = vrot.slane %v1617, 7
        %v1619 = vrot.slane %v1617, 1
        %v1620 = vrot.slane %v1617, 2
        %v1621 = vrot.slane %v1617, 3
        %v1622 = vrot.slane %v1617, 4
        %v1623 = vrot.slane %v1617, 5
        %v1624 = vrot.slane %v1617, 6
        %v1633 = vsel %vm1580, %v1618, 1.0
        %v1634 = vsel %vm1580, %v1617, 1.0
        %v1635 = vsel %vm1580, %v1619, 1.0
        %v1636 = vsel %vm1580, %v1620, 1.0
        %v1637 = vsel %vm1580, %v1621, 1.0
        %v1638 = vsel %vm1580, %v1622, 1.0
        %v1639 = vsel %vm1580, %v1623, 1.0
        %v1640 = vsel %vm1580, %v1624, 1.0
        %v1649 = vrot.slane %v1633, 1
        %v1650 = vrot.slane %v1634, 1
        %v1651 = vrot.slane %v1635, 1
        %v1652 = vrot.slane %v1636, 1
        %v1653 = vrot.slane %v1637, 1
        %v1654 = vrot.slane %v1638, 1
        %v1655 = vrot.slane %v1639, 1
        %v1656 = vrot.slane %v1640, 1
        %v1665 = vmul.f32 %v1607, %v1649
        %v1666 = vmul.f32 %v1608, %v1650
        %v1667 = vmul.f32 %v1609, %v1651
        %v1668 = vmul.f32 %v1610, %v1652
        %v1669 = vmul.f32 %v1611, %v1653
        %v1670 = vmul.f32 %v1612, %v1654
        %v1671 = vmul.f32 %v1613, %v1655
        %v1672 = vmul.f32 %v1614, %v1656
        %1673 = vset.pattern.permute.xlu0 26
        %1674 = vperm.xlu0 %1673, %v216
        %v1675 = vpop.permute.xlu0 %1674
        %v1676 = vrot.slane %v1675, 6
        %v1677 = vrot.slane %v1675, 7
        %v1678 = vrot.slane %v1675, 1
        %v1679 = vrot.slane %v1675, 2
        %v1680 = vrot.slane %v1675, 3
        %v1681 = vrot.slane %v1675, 4
        %v1682 = vrot.slane %v1675, 5
        %v1691 = vsel %vm1580, %v1676, 1.0
        %v1692 = vsel %vm1580, %v1677, 1.0
        %v1693 = vsel %vm1580, %v1675, 1.0
        %v1694 = vsel %vm1580, %v1678, 1.0
        %v1695 = vsel %vm1580, %v1679, 1.0
        %v1696 = vsel %vm1580, %v1680, 1.0
        %v1697 = vsel %vm1580, %v1681, 1.0
        %v1698 = vsel %vm1580, %v1682, 1.0
        %v1707 = vrot.slane %v1691, 2
        %v1708 = vrot.slane %v1692, 2
        %v1709 = vrot.slane %v1693, 2
        %v1710 = vrot.slane %v1694, 2
        %v1711 = vrot.slane %v1695, 2
        %v1712 = vrot.slane %v1696, 2
        %v1713 = vrot.slane %v1697, 2
        %v1714 = vrot.slane %v1698, 2
        %v1723 = vmul.f32 %v1665, %v1707
        %v1724 = vmul.f32 %v1666, %v1708
        %v1725 = vmul.f32 %v1667, %v1709
        %v1726 = vmul.f32 %v1668, %v1710
        %v1727 = vmul.f32 %v1669, %v1711
        %v1728 = vmul.f32 %v1670, %v1712
        %v1729 = vmul.f32 %v1671, %v1713
        %v1730 = vmul.f32 %v1672, %v1714
        %1731 = vset.pattern.permute.xlu0 27
        %1732 = vperm.xlu0 %1731, %v216
        %v1733 = vpop.permute.xlu0 %1732
        %v1734 = vrot.slane %v1733, 5
        %v1735 = vrot.slane %v1733, 6
        %v1736 = vrot.slane %v1733, 7
        %v1737 = vrot.slane %v1733, 1
        %v1738 = vrot.slane %v1733, 2
        %v1739 = vrot.slane %v1733, 3
        %v1740 = vrot.slane %v1733, 4
        %v1749 = vsel %vm1580, %v1734, 1.0
        %v1750 = vsel %vm1580, %v1735, 1.0
        %v1751 = vsel %vm1580, %v1736, 1.0
        %v1752 = vsel %vm1580, %v1733, 1.0
        %v1753 = vsel %vm1580, %v1737, 1.0
        %v1754 = vsel %vm1580, %v1738, 1.0
        %v1755 = vsel %vm1580, %v1739, 1.0
        %v1756 = vsel %vm1580, %v1740, 1.0
        %v1765 = vrot.slane %v1749, 3
        %v1766 = vrot.slane %v1750, 3
        %v1767 = vrot.slane %v1751, 3
        %v1768 = vrot.slane %v1752, 3
        %v1769 = vrot.slane %v1753, 3
        %v1770 = vrot.slane %v1754, 3
        %v1771 = vrot.slane %v1755, 3
        %v1772 = vrot.slane %v1756, 3
        %v1781 = vmul.f32 %v1723, %v1765
        %v1782 = vmul.f32 %v1724, %v1766
        %v1783 = vmul.f32 %v1725, %v1767
        %v1784 = vmul.f32 %v1726, %v1768
        %v1785 = vmul.f32 %v1727, %v1769
        %v1786 = vmul.f32 %v1728, %v1770
        %v1787 = vmul.f32 %v1729, %v1771
        %v1788 = vmul.f32 %v1730, %v1772
        %1789 = vset.pattern.permute.xlu0 28
        %1790 = vperm.xlu0 %1789, %v216
        %v1791 = vpop.permute.xlu0 %1790
        %v1792 = vrot.slane %v1791, 4
        %v1793 = vrot.slane %v1791, 5
        %v1794 = vrot.slane %v1791, 6
        %v1795 = vrot.slane %v1791, 7
        %v1796 = vrot.slane %v1791, 1
        %v1797 = vrot.slane %v1791, 2
        %v1798 = vrot.slane %v1791, 3
        %v1807 = vsel %vm1580, %v1792, 1.0
        %v1808 = vsel %vm1580, %v1793, 1.0
        %v1809 = vsel %vm1580, %v1794, 1.0
        %v1810 = vsel %vm1580, %v1795, 1.0
        %v1811 = vsel %vm1580, %v1791, 1.0
        %v1812 = vsel %vm1580, %v1796, 1.0
        %v1813 = vsel %vm1580, %v1797, 1.0
        %v1814 = vsel %vm1580, %v1798, 1.0
        %v1823 = vrot.slane %v1807, 4
        %v1824 = vrot.slane %v1808, 4
        %v1825 = vrot.slane %v1809, 4
        %v1826 = vrot.slane %v1810, 4
        %v1827 = vrot.slane %v1811, 4
        %v1828 = vrot.slane %v1812, 4
        %v1829 = vrot.slane %v1813, 4
        %v1830 = vrot.slane %v1814, 4
        %v1839 = vmul.f32 %v1781, %v1823
        %v1840 = vmul.f32 %v1782, %v1824
        %v1841 = vmul.f32 %v1783, %v1825
        %v1842 = vmul.f32 %v1784, %v1826
        %v1843 = vmul.f32 %v1785, %v1827
        %v1844 = vmul.f32 %v1786, %v1828
        %v1845 = vmul.f32 %v1787, %v1829
        %v1846 = vmul.f32 %v1788, %v1830
        %1847 = vset.pattern.permute.xlu0 29
        %1848 = vperm.xlu0 %1847, %v216
        %v1849 = vpop.permute.xlu0 %1848
        %v1850 = vrot.slane %v1849, 3
        %v1851 = vrot.slane %v1849, 4
        %v1852 = vrot.slane %v1849, 5
        %v1853 = vrot.slane %v1849, 6
        %v1854 = vrot.slane %v1849, 7
        %v1855 = vrot.slane %v1849, 1
        %v1856 = vrot.slane %v1849, 2
        %v1865 = vsel %vm1580, %v1850, 1.0
        %v1866 = vsel %vm1580, %v1851, 1.0
        %v1867 = vsel %vm1580, %v1852, 1.0
        %v1868 = vsel %vm1580, %v1853, 1.0
        %v1869 = vsel %vm1580, %v1854, 1.0
        %v1870 = vsel %vm1580, %v1849, 1.0
        %v1871 = vsel %vm1580, %v1855, 1.0
        %v1872 = vsel %vm1580, %v1856, 1.0
        %v1881 = vrot.slane %v1865, 5
        %v1882 = vrot.slane %v1866, 5
        %v1883 = vrot.slane %v1867, 5
        %v1884 = vrot.slane %v1868, 5
        %v1885 = vrot.slane %v1869, 5
        %v1886 = vrot.slane %v1870, 5
        %v1887 = vrot.slane %v1871, 5
        %v1888 = vrot.slane %v1872, 5
        %v1897 = vmul.f32 %v1839, %v1881
        %v1898 = vmul.f32 %v1840, %v1882
        %v1899 = vmul.f32 %v1841, %v1883
        %v1900 = vmul.f32 %v1842, %v1884
        %v1901 = vmul.f32 %v1843, %v1885
        %v1902 = vmul.f32 %v1844, %v1886
        %v1903 = vmul.f32 %v1845, %v1887
        %v1904 = vmul.f32 %v1846, %v1888
        %1905 = vset.pattern.permute.xlu0 30
        %1906 = vperm.xlu0 %1905, %v216
        %v1907 = vpop.permute.xlu0 %1906
        %v1908 = vrot.slane %v1907, 2
        %v1909 = vrot.slane %v1907, 3
        %v1910 = vrot.slane %v1907, 4
        %v1911 = vrot.slane %v1907, 5
        %v1912 = vrot.slane %v1907, 6
        %v1913 = vrot.slane %v1907, 7
        %v1914 = vrot.slane %v1907, 1
        %v1923 = vsel %vm1580, %v1908, 1.0
        %v1924 = vsel %vm1580, %v1909, 1.0
        %v1925 = vsel %vm1580, %v1910, 1.0
        %v1926 = vsel %vm1580, %v1911, 1.0
        %v1927 = vsel %vm1580, %v1912, 1.0
        %v1928 = vsel %vm1580, %v1913, 1.0
        %v1929 = vsel %vm1580, %v1907, 1.0
        %v1930 = vsel %vm1580, %v1914, 1.0
        %v1939 = vrot.slane %v1923, 6
        %v1940 = vrot.slane %v1924, 6
        %v1941 = vrot.slane %v1925, 6
        %v1942 = vrot.slane %v1926, 6
        %v1943 = vrot.slane %v1927, 6
        %v1944 = vrot.slane %v1928, 6
        %v1945 = vrot.slane %v1929, 6
        %v1946 = vrot.slane %v1930, 6
        %v1955 = vmul.f32 %v1897, %v1939
        %v1956 = vmul.f32 %v1898, %v1940
        %v1957 = vmul.f32 %v1899, %v1941
        %v1958 = vmul.f32 %v1900, %v1942
        %v1959 = vmul.f32 %v1901, %v1943
        %v1960 = vmul.f32 %v1902, %v1944
        %v1961 = vmul.f32 %v1903, %v1945
        %v1962 = vmul.f32 %v1904, %v1946
        %1963 = vset.pattern.permute.xlu0 31
        %1964 = vperm.xlu0 %1963, %v216
        %v1965 = vpop.permute.xlu0 %1964
        %v1966 = vrot.slane %v1965, 1
        %v1967 = vrot.slane %v1965, 2
        %v1968 = vrot.slane %v1965, 3
        %v1969 = vrot.slane %v1965, 4
        %v1970 = vrot.slane %v1965, 5
        %v1971 = vrot.slane %v1965, 6
        %v1972 = vrot.slane %v1965, 7
        %v1981 = vsel %vm1580, %v1966, 1.0
        %v1982 = vsel %vm1580, %v1967, 1.0
        %v1983 = vsel %vm1580, %v1968, 1.0
        %v1984 = vsel %vm1580, %v1969, 1.0
        %v1985 = vsel %vm1580, %v1970, 1.0
        %v1986 = vsel %vm1580, %v1971, 1.0
        %v1987 = vsel %vm1580, %v1972, 1.0
        %v1988 = vsel %vm1580, %v1965, 1.0
        %v1997 = vrot.slane %v1981, 7
        %v1998 = vrot.slane %v1982, 7
        %v1999 = vrot.slane %v1983, 7
        %v2000 = vrot.slane %v1984, 7
        %v2001 = vrot.slane %v1985, 7
        %v2002 = vrot.slane %v1986, 7
        %v2003 = vrot.slane %v1987, 7
        %v2004 = vrot.slane %v1988, 7
        %v2013 = vmul.f32 %v1955, %v1997
        %v2014 = vmul.f32 %v1956, %v1998
        %v2015 = vmul.f32 %v1957, %v1999
        %v2016 = vmul.f32 %v1958, %v2000
        %v2017 = vmul.f32 %v1959, %v2001
        %v2018 = vmul.f32 %v1960, %v2002
        %v2019 = vmul.f32 %v1961, %v2003
        %v2020 = vmul.f32 %v1962, %v2004
        %vm2021 = vcmp.gt.f32.partialorder %v259, 0.0
        %v2030 = vrot.slane %v2014, 7
        %vm2031 = vcmask 1041409
        %v2032 = vsel %vm2031, %v2030, %v2013
        %v2033 = vrot.slane %v2015, 6
        %vm2034 = vcmask 1042434
        %v2035 = vsel %vm2034, %v2033, %v2032
        %v2036 = vrot.slane %v2016, 5
        %vm2037 = vcmask 1043459
        %v2038 = vsel %vm2037, %v2036, %v2035
        %v2039 = vrot.slane %v2017, 4
        %vm2040 = vcmask 1044484
        %v2041 = vsel %vm2040, %v2039, %v2038
        %v2042 = vrot.slane %v2018, 3
        %vm2043 = vcmask 1045509
        %v2044 = vsel %vm2043, %v2042, %v2041
        %v2045 = vrot.slane %v2019, 2
        %vm2046 = vcmask 1046534
        %v2047 = vsel %vm2046, %v2045, %v2044
        %v2048 = vrot.slane %v2020, 1
        %vm2049 = vcmask 1047559
        %v2050 = vsel %vm2049, %v2048, %v2047
        %v2052 = vsel %vm2021, %v2050, 0.0
        %2053 = vst [vmem:[%s194] sm:$0xff] %v2052
        %s2054 = sand.u32 %s94, 1
        %s2055 = scalar_lea.sflag [#allocation4], %s2054
        %s2056 = sand.u32 %s94, 1
        %s2057 = smul.addr %s2056, 8
        %s2058 = scalar_lea.vmem [#allocation7], %s2057
        // Predicated region
        $region37: #{tpu_custom_call.1} parent=27 // pred_check
          %p2059 = pneg %p104
        $region38: #{tpu_custom_call.1} parent=27 // pred_check_branch
          %2061 = sbr.rel (%p2059) target = $region40
        $region39: #{tpu_custom_call.1} parent=27 // pred_region
          %s2063 = ssub.s32 128, 128
          %2064 = vsyncadd %s2055, %s2063
          %s2065 = sadd.s32 %s24, %s25
          %s2066 = smul.addr %s2065, 128
          %s2067 = scalar_lea.hbm %s2, %s2066
          %s2069 = sshll.u32 %s2058, 4
          %s2070 = int_to_ptr.vmem [resolvable:$true] %s2069
          %2072 = dma.vmem_to_hbm [thread:$0]  %s2070, 128, %s2067, %s2055
        $region40: #{tpu_custom_call.1} parent=27 // pred_fallthru
          _
      $region28: #{tpu_custom_call.1} parent=5 // pred_fallthru
        _
      %p2073 = scmp.le.s32.totalorder 2, %s15
      // Predicated region
      $region41: #{tpu_custom_call.1} parent=5 // pred_check
        %p2074 = pneg %p2073
      $region42: #{tpu_custom_call.1} parent=5 // pred_check_branch
        %2076 = sbr.rel (%p2074) target = $region44
      $region43: #{tpu_custom_call.1} parent=5 // pred_region
        %s2077 = ssub.s32 %s15, 2
        // Predicated region
        $region45: #{tpu_custom_call.1} parent=43 // pred_check
          %p2078 = pneg %p110
        $region46: #{tpu_custom_call.1} parent=43 // pred_check_branch
          %2080 = sbr.rel (%p2078) target = $region48
        $region47: #{tpu_custom_call.1} parent=43 // pred_region
          %s2081 = sand.u32 %s95, 1
          %s2082 = scalar_lea.sflag [#allocation4], %s2081
          %s2083 = sand.u32 %s95, 1
          %s2084 = smul.addr %s2083, 8
          %s2085 = scalar_lea.vmem [#allocation7], %s2084
          %2086 = dma.done %s2082, 128
        $region48: #{tpu_custom_call.1} parent=43 // pred_fallthru
          _
      $region44: #{tpu_custom_call.1} parent=5 // pred_fallthru
        _
    $region6: #{tpu_custom_call.1} parent=1 // loop_footer
      %s19 = sadd.s32 1, %s15
    $region7: #{tpu_custom_call.1} parent=1 // loop_footer_branch
      %14 = sbr.rel target = $region3
    $region8: #{tpu_custom_call.1} parent=1 // loop_exit
      _
    %2087 = vsyncpa [#allocation3], 1
    %s2088 = scalar_lea.sflag [#allocation3], 1
    %2089 = vsyncpa %s2088, 1
    %2090 = vsyncpa [#allocation6], 1
    %2091 = vsyncpa [#allocation4], 1
    %s2092 = scalar_lea.sflag [#allocation4], 1
    %2093 = vsyncpa %s2092, 1

</llo_original>
